<compile_context>
chip_gen: v7x
topology: tpu7x:2x2x1
jax: 0.10.0
libtpu: 0.0.40
codegen_flags: <defaults>
</compile_context>

<pallas_src>
import functools

import jax
import jax.numpy as jnp
from jax.experimental import pallas as pl
from jax.experimental.pallas import tpu as pltpu


# ----------------------------------------------------------------- hw queries


def _vmem_capacity_bytes():
    try:
        return int(pltpu.get_tpu_info().vmem_capacity_bytes)
    except Exception:
        return 64 * 1024 * 1024  # conservative default: v7x physical VMEM


def _device_kind():
    try:
        return jax.devices()[0].device_kind.lower()
    except Exception:
        return ""


def _default_num_cores():
    kind = _device_kind()
    # v7x has 2 TensorCores per chip; split the batch axis across them.
    if "7x" in kind or "v7" in kind:
        return 2
    return 1


def _default_fuse_grams(g):
    if 2 * g > 256:
        return False
    kind = _device_kind()
    # v5e and older have 128-wide MXU tiles already filled by a G<=128 Gram.
    for old in ("v2", "v3", "v4", "v5"):
        if old in kind:
            return False
    return True


def _choose_tile_n(n_rows, g, itemsize, num_cores, with_corr, fuse_grams,
                   vmem_budget):
    """Biggest batch tile that keeps inputs + resident accumulators in budget."""
    if with_corr:
        gram_elems = (2 * g) * (2 * g) if fuse_grams else 2 * g * g
        resident = (gram_elems + 3 * g) * 4          # f32 output accumulators
    else:
        resident = g * 4
    # 3 inputs x 2 pipeline buffers x itemsize + ~8 f32 elementwise temporaries.
    per_row = g * (3 * 2 * itemsize + 8 * 4)
    mult = max(8, 32 // max(1, itemsize))             # sublane-packing friendly
    avail = vmem_budget - 2 * resident - (2 << 20)
    if avail < per_row * mult:
        # Resident Grams already (nearly) exhaust VMEM; keep the minimum tile.
        return mult
    tile = min(avail // per_row, 4096)
    rows_per_core = -(-n_rows // max(1, num_cores))
    tile = min(tile, -(-rows_per_core // mult) * mult)
    return int(max(mult, (tile // mult) * mult))


# --------------------------------------------------------------------- kernels


def _wmse_stats_kernel(o_ref, t_ref, c_ref, wse_ref, *, epsilon, approx_recip):
    """Streaming per-column weighted-squared-error sums (penalty-free path)."""
    k = pl.program_id(1)

    @pl.when(k == 0)
    def _init():
        wse_ref[...] = jnp.zeros_like(wse_ref)

    o = o_ref[...].astype(jnp.float32)
    t = t_ref[...].astype(jnp.float32)
    c = c_ref[...].astype(jnp.float32)

    gene_diff = jnp.abs(t - c)
    row_mean = jnp.mean(gene_diff, axis=1, keepdims=True) + epsilon
    inv_row = (pl.reciprocal(row_mean, approx=True) if approx_recip
               else 1.0 / row_mean)
    w = gene_diff * inv_row                       # .detach(): forward-only
    err = o - t
    # Per-column (1, G) accumulation: no cross-lane reduce / SMEM scalar RMW
    # per grid step; zero-padded rows contribute exactly 0.
    wse_ref[...] += jnp.sum(w * (err * err), axis=0, keepdims=True)[None]


def _wmse_corr_stats_kernel(o_ref, t_ref, c_ref,
                            wse_ref, sum_o_ref, sum_t_ref, *gram_refs,
                            epsilon, approx_recip, fuse_grams, gram_dtype):
    """Weighted-MSE partials + streaming column sums and Gram matrices."""
    k = pl.program_id(1)

    @pl.when(k == 0)
    def _init():
        wse_ref[...] = jnp.zeros_like(wse_ref)
        sum_o_ref[...] = jnp.zeros_like(sum_o_ref)
        sum_t_ref[...] = jnp.zeros_like(sum_t_ref)
        for gr in gram_refs:
            gr[...] = jnp.zeros_like(gr)

    o = o_ref[...].astype(jnp.float32)
    t = t_ref[...].astype(jnp.float32)
    c = c_ref[...].astype(jnp.float32)

    # ---- weighted MSE per-column partials -----------------------------------
    gene_diff = jnp.abs(t - c)
    row_mean = jnp.mean(gene_diff, axis=1, keepdims=True) + epsilon
    inv_row = (pl.reciprocal(row_mean, approx=True) if approx_recip
               else 1.0 / row_mean)
    w = gene_diff * inv_row
    err = o - t
    wse_ref[...] += jnp.sum(w * (err * err), axis=0, keepdims=True)[None]

    # ---- streaming column stats (variance read from diag(Gram) at finalize) --
    sum_o_ref[...] += jnp.sum(o, axis=0, keepdims=True)[None]
    sum_t_ref[...] += jnp.sum(t, axis=0, keepdims=True)[None]

    o_g = o_ref[...].astype(gram_dtype)
    t_g = t_ref[...].astype(gram_dtype)
    dims = (((0,), (0,)), ((), ()))   # contract rows of both: X^T X, no transpose
    if fuse_grams:
        # [o | t] fused Gram fills the 256-wide MXU when 2*G <= 256 (v6e/v7x).
        x = jnp.concatenate([o_g, t_g], axis=1)
        gram_refs[0][...] += jax.lax.dot_general(
            x, x, dims, preferred_element_type=jnp.float32)[None]
    else:
        gram_refs[0][...] += jax.lax.dot_general(
            o_g, o_g, dims, preferred_element_type=jnp.float32)[None]
        gram_refs[1][...] += jax.lax.dot_general(
            t_g, t_g, dims, preferred_element_type=jnp.float32)[None]


def _corr_penalty_kernel(gram_o_ref, gram_t_ref,
                         isd_o_r, isd_t_r, u_o_r, u_t_r,
                         isd_o_c, isd_t_c, u_o_c, u_t_c,
                         out_ref, acc):
    """Blocked (Gi, Gj) evaluation of sum((corr_o - corr_t)^2)."""
    i = pl.program_id(0)
    j = pl.program_id(1)

    @pl.when(jnp.logical_and(i == 0, j == 0))
    def _init():
        acc[0] = 0.0

    # corr = (gram - outer(s, s)/n) * outer(isd, isd)
    #      = gram * outer(isd, isd) - outer(u, u),  u = s * isd / sqrt(n)
    # Zero-variance columns (isd == 0) reproduce torch.nan_to_num(corr) == 0,
    # and padded genes (isd == 0, gram == 0) contribute exactly 0.
    r_o = jnp.clip(gram_o_ref[...] * (isd_o_r[...] * isd_o_c[...])
                   - u_o_r[...] * u_o_c[...], -1.0, 1.0)
    r_t = jnp.clip(gram_t_ref[...] * (isd_t_r[...] * isd_t_c[...])
                   - u_t_r[...] * u_t_c[...], -1.0, 1.0)
    d = r_o - r_t
    acc[0] += jnp.sum(d * d)

    @pl.when(jnp.logical_and(i == pl.num_programs(0) - 1,
                             j == pl.num_programs(1) - 1))
    def _done():
        out_ref[0, 0] = acc[0]


# --------------------------------------------------------------------- wrapper


def weighted_mse_loss(outputs, targets, control, epsilon=1e-3, penalty_alpha=0.0,
                      tile_n=None, num_cores=None, fuse_grams=None,
                      gram_in_bfloat16=False, approx_reciprocal=True):
    """Forward pass of the PyTorch WeightedMSELoss module."""
    assert outputs.shape == targets.shape == control.shape
    assert outputs.ndim == 2, "expected (batch, genes)"
    n, g = outputs.shape
    itemsize = jnp.dtype(outputs.dtype).itemsize
    with_corr = penalty_alpha != 0.0
    gram_dtype = jnp.bfloat16 if gram_in_bfloat16 else outputs.dtype

    if num_cores is None:
        num_cores = _default_num_cores()
    num_cores = max(1, int(num_cores))
    if fuse_grams is None:
        fuse_grams = with_corr and _default_fuse_grams(g)
    fuse_grams = bool(fuse_grams) and with_corr

    vmem_budget = int(_vmem_capacity_bytes() * 0.7)   # headroom for compiler scratch
    if tile_n is None:
        tile_n = _choose_tile_n(n, g, itemsize, num_cores, with_corr,
                                fuse_grams, vmem_budget)
    tile_n = max(8, (int(tile_n) // 8) * 8)

    blocks = pl.cdiv(n, tile_n)
    steps = pl.cdiv(blocks, num_cores)                # reduction steps per core
    n_pad = num_cores * steps * tile_n
    if n_pad != n:
        # Zero rows contribute 0 to every streamed statistic; all means divide
        # by the true n / g below.
        pad = ((0, n_pad - n), (0, 0))
        outputs = jnp.pad(outputs, pad)
        targets = jnp.pad(targets, pad)
        control = jnp.pad(control, pad)

    grid = (num_cores, steps)
    in_spec = pl.BlockSpec((tile_n, g), lambda p, k: (p * steps + k, 0))
    vec_out_spec = pl.BlockSpec((1, 1, g), lambda p, k: (p, 0, 0))

    compiler_params = pltpu.CompilerParams(
        dimension_semantics=("parallel", "arbitrary"),
        vmem_limit_bytes=vmem_budget,
    )
    inv_ng = 1.0 / (n * g)

    # ---------------------------------------------------------------- MSE only
    if not with_corr:
        kernel = functools.partial(_wmse_stats_kernel, epsilon=float(epsilon),
                                   approx_recip=approx_reciprocal)
        wse = pl.pallas_call(
            kernel,
            out_shape=jax.ShapeDtypeStruct((num_cores, 1, g), jnp.float32),
            grid_spec=pltpu.PrefetchScalarGridSpec(
                num_scalar_prefetch=0, grid=grid,
                in_specs=[in_spec, in_spec, in_spec],
                out_specs=vec_out_spec),
            compiler_params=compiler_params,
            cost_estimate=pl.CostEstimate(
                flops=10 * n_pad * g, transcendentals=n_pad,
                bytes_accessed=3 * n_pad * g * itemsize + 4 * num_cores * g),
        )(outputs, targets, control)
        # Tiny cross-core / cross-column combine in JAX (per perf review).
        return (jnp.sum(wse) * inv_ng).astype(jnp.float32)

    # --------------------------------------------------- MSE + corr penalty
    gg = 2 * g if fuse_grams else g
    n_grams = 1 if fuse_grams else 2
    gram_out_shapes = [jax.ShapeDtypeStruct((num_cores, gg, gg), jnp.float32)
                       for _ in range(n_grams)]
    gram_out_specs = [pl.BlockSpec((1, gg, gg), lambda p, k: (p, 0, 0))
                      for _ in range(n_grams)]

    kernel = functools.partial(_wmse_corr_stats_kernel, epsilon=float(epsilon),
                               approx_recip=approx_reciprocal,
                               fuse_grams=fuse_grams, gram_dtype=gram_dtype)
    outs = pl.pallas_call(
        kernel,
        out_shape=tuple([jax.ShapeDtypeStruct((num_cores, 1, g), jnp.float32)] * 3
                        + gram_out_shapes),
        grid_spec=pltpu.PrefetchScalarGridSpec(
            num_scalar_prefetch=0, grid=grid,
            in_specs=[in_spec, in_spec, in_spec],
            out_specs=tuple([vec_out_spec] * 3 + gram_out_specs)),
        compiler_params=compiler_params,
        cost_estimate=pl.CostEstimate(
            flops=2 * n_pad * gg * gg + 14 * n_pad * g,
            transcendentals=n_pad,
            bytes_accessed=(3 * n_pad * g * itemsize
                            + 4 * num_cores * (3 * g + n_grams * gg * gg))),
    )(outputs, targets, control)

    wse_p, sum_o_p, sum_t_p = outs[0], outs[1], outs[2]
    mse = jnp.sum(wse_p) * inv_ng

    # Combine per-core partials (one G^2 add + scalar adds) in JAX.
    sum_o = jnp.sum(sum_o_p, axis=0)[0]               # (G,)
    sum_t = jnp.sum(sum_t_p, axis=0)[0]
    if fuse_grams:
        gram = jnp.sum(outs[3], axis=0)               # (2G, 2G)
        gram_o = gram[:g, :g]
        gram_t = gram[g:, g:]
    else:
        gram_o = jnp.sum(outs[3], axis=0)
        gram_t = jnp.sum(outs[4], axis=0)

    inv_n = jnp.float32(1.0 / n)
    inv_sqrt_n = jnp.float32(1.0) / jnp.sqrt(jnp.float32(n))

    def col_factors(gram, s):
        var = jnp.maximum(jnp.diagonal(gram) - s * s * inv_n, 0.0)   # (G,)
        isd = jnp.where(var > 0.0, jax.lax.rsqrt(var), 0.0)
        return isd, s * isd * inv_sqrt_n

    isd_o, u_o = col_factors(gram_o, sum_o)
    isd_t, u_t = col_factors(gram_t, sum_t)

    # Blocked finalize over (Gi, Gj) tiles: VMEM is O(tile^2) instead of O(G^2)
    # temporaries, and padded genes (zeroed factors) contribute exactly 0.
    tg = 256 if g >= 256 else 128
    g_pad = pl.cdiv(g, tg) * tg
    pad2 = (lambda m: jnp.pad(m, ((0, g_pad - g), (0, g_pad - g)))
            if g_pad != g else m)
    pad1 = lambda v: jnp.pad(v, (0, g_pad - g)) if g_pad != g else v
    row = lambda v: pad1(v).reshape(g_pad, 1)
    col = lambda v: pad1(v).reshape(1, g_pad)

    gram_spec = pl.BlockSpec((tg, tg), lambda i, j: (i, j))
    row_spec = pl.BlockSpec((tg, 1), lambda i, j: (i, 0))
    col_spec = pl.BlockSpec((1, tg), lambda i, j: (0, j))
    scalar_out_spec = pl.BlockSpec((1, 1), lambda i, j: (0, 0),
                                   memory_space=pltpu.MemorySpace.SMEM)

    corr_sq = pl.pallas_call(
        _corr_penalty_kernel,
        out_shape=jax.ShapeDtypeStruct((1, 1), jnp.float32),
        grid_spec=pltpu.PrefetchScalarGridSpec(
            num_scalar_prefetch=0,
            grid=(g_pad // tg, g_pad // tg),
            in_specs=[gram_spec, gram_spec,
                      row_spec, row_spec, row_spec, row_spec,
                      col_spec, col_spec, col_spec, col_spec],
            out_specs=scalar_out_spec,
            scratch_shapes=[pltpu.SMEM((1,), jnp.float32)]),
        compiler_params=pltpu.CompilerParams(
            dimension_semantics=("arbitrary", "arbitrary"),
            vmem_limit_bytes=min(vmem_budget, 32 * 1024 * 1024)),
        cost_estimate=pl.CostEstimate(
            flops=14 * g_pad * g_pad, transcendentals=0,
            bytes_accessed=2 * g_pad * g_pad * 4),
    )(pad2(gram_o), pad2(gram_t),
      row(isd_o), row(isd_t), row(u_o), row(u_t),
      col(isd_o), col(isd_t), col(u_o), col(u_t))

    corr_pen = corr_sq[0, 0] / jnp.float32(g * g)
    return (mse + penalty_alpha * corr_pen).astype(jnp.float32)


# ------------------------------------------------------------------- reference


def _reference(outputs, targets, control, epsilon=1e-3, penalty_alpha=0.0):
    gene_diff = jnp.abs(targets - control)
    weights = gene_diff / (jnp.mean(gene_diff, axis=1, keepdims=True) + epsilon)
    mse = jnp.mean(weights * (outputs - targets) ** 2)

    def corr(x):
        xc = x - jnp.mean(x, axis=0, keepdims=True)
        cov = xc.T @ xc
        d = jnp.diag(cov)
        r = cov / jnp.sqrt(d[:, None] * d[None, :])
        r = jnp.nan_to_num(r, nan=0.0)
        return jnp.clip(r, -1.0, 1.0)

    corr_pen = jnp.mean((corr(outputs) - corr(targets)) ** 2)
    return mse + penalty_alpha * corr_pen


if __name__ == "__main__":
    N, G = 24, 128      # batch x genes (lane-aligned gene dim)
    key = jax.random.PRNGKey(0)
    k1, k2, k3 = jax.random.split(key, 3)
    outputs = jax.random.normal(k1, (N, G), dtype=jnp.float32)
    targets = jax.random.normal(k2, (N, G), dtype=jnp.float32)
    control = jax.random.normal(k3, (N, G), dtype=jnp.float32)

    eps = 1e-3
    # Full path: small tiles force a multi-step reduction, a 2-way core split
    # (runs sequentially & correctly on 1-TC chips) and the fused [o|t] Gram.
    loss_full_fused = weighted_mse_loss(outputs, targets, control, epsilon=eps,
                                        penalty_alpha=0.1, tile_n=8,
                                        num_cores=2, fuse_grams=True)
    # Full path with separate Grams on a single logical core (v5e-style).
    loss_full_sep = weighted_mse_loss(outputs, targets, control, epsilon=eps,
                                      penalty_alpha=0.1, tile_n=8,
                                      num_cores=1, fuse_grams=False)
    # Module-default path: penalty_alpha == 0 skips all correlation work.
    loss_mse = weighted_mse_loss(outputs, targets, control, epsilon=eps,
                                 penalty_alpha=0.0)
    results = jax.block_until_ready((loss_full_fused, loss_full_sep, loss_mse))

    ref_full = _reference(outputs, targets, control, epsilon=eps, penalty_alpha=0.1)
    ref_mse = _reference(outputs, targets, control, epsilon=eps, penalty_alpha=0.0)

    # 2e-3 tolerance: the approximate EUP reciprocal in the weight
    # normalization carries ~1e-4..1e-3 relative error (set
    # approx_reciprocal=False for exact parity).
    assert jnp.allclose(results[0], ref_full, rtol=2e-3, atol=2e-3), (results[0], ref_full)
    assert jnp.allclose(results[1], ref_full, rtol=2e-3, atol=2e-3), (results[1], ref_full)
    assert jnp.allclose(results[2], ref_mse, rtol=2e-3, atol=2e-3), (results[2], ref_mse)
    print("KERNEL_OK")
</pallas_src>

<mosaic_0001>
module attributes {stable_mosaic.version = 11 : i64} {
  func.func @_wmse_corr_stats_kernel(%arg0: i32, %arg1: i32, %arg2: memref<8x128xf32, #tpu.memory_space<vmem>>, %arg3: memref<8x128xf32, #tpu.memory_space<vmem>>, %arg4: memref<8x128xf32, #tpu.memory_space<vmem>>, %arg5: memref<1x1x128xf32, #tpu.memory_space<vmem>>, %arg6: memref<1x1x128xf32, #tpu.memory_space<vmem>>, %arg7: memref<1x1x128xf32, #tpu.memory_space<vmem>>, %arg8: memref<1x256x256xf32, #tpu.memory_space<vmem>>) attributes {dimension_semantics = [#tpu.dimension_semantics<parallel>, #tpu.dimension_semantics<arbitrary>], iteration_bounds = array<i64: 2, 2>, scalar_prefetch = 0 : i64, scratch_operands = 0 : i64, tpu.core_type = #tpu.core_type<tc>, window_params = [{transform_indices = @transform_0, window_bounds = array<i64: 8, 128>}, {transform_indices = @transform_1, window_bounds = array<i64: 8, 128>}, {transform_indices = @transform_2, window_bounds = array<i64: 8, 128>}, {transform_indices = @transform_3, window_bounds = array<i64: 1, 1, 128>}, {transform_indices = @transform_4, window_bounds = array<i64: 1, 1, 128>}, {transform_indices = @transform_5, window_bounds = array<i64: 1, 1, 128>}, {transform_indices = @transform_6, window_bounds = array<i64: 1, 256, 256>}]} {
    %c0_i32 = arith.constant 0 : i32
    %0 = arith.cmpi eq, %arg1, %c0_i32 : i32
    %1 = arith.extui %0 : i1 to i32
    %c0_i32_0 = arith.constant 0 : i32
    %2 = arith.cmpi ne, %1, %c0_i32_0 : i32
    scf.if %2 {
      %cst_40 = arith.constant 0.000000e+00 : f32
      %46 = vector.broadcast %cst_40 : f32 to vector<1x1x128xf32>
      %c0_41 = arith.constant 0 : index
      %c0_42 = arith.constant 0 : index
      %c0_43 = arith.constant 0 : index
      %47 = vector.load %arg5[%c0_41, %c0_42, %c0_43] : memref<1x1x128xf32, #tpu.memory_space<vmem>>, vector<1x1x128xf32>
      tpu.vector_store %arg5[%c0_41, %c0_42, %c0_43], %46 {strides = array<i32>} : memref<1x1x128xf32, #tpu.memory_space<vmem>>, vector<1x1x128xf32>,
      %cst_44 = arith.constant 0.000000e+00 : f32
      %48 = vector.broadcast %cst_44 : f32 to vector<1x1x128xf32>
      %c0_45 = arith.constant 0 : index
      %c0_46 = arith.constant 0 : index
      %c0_47 = arith.constant 0 : index
      %49 = vector.load %arg6[%c0_45, %c0_46, %c0_47] : memref<1x1x128xf32, #tpu.memory_space<vmem>>, vector<1x1x128xf32>
      tpu.vector_store %arg6[%c0_45, %c0_46, %c0_47], %48 {strides = array<i32>} : memref<1x1x128xf32, #tpu.memory_space<vmem>>, vector<1x1x128xf32>,
      %cst_48 = arith.constant 0.000000e+00 : f32
      %50 = vector.broadcast %cst_48 : f32 to vector<1x1x128xf32>
      %c0_49 = arith.constant 0 : index
      %c0_50 = arith.constant 0 : index
      %c0_51 = arith.constant 0 : index
      %51 = vector.load %arg7[%c0_49, %c0_50, %c0_51] : memref<1x1x128xf32, #tpu.memory_space<vmem>>, vector<1x1x128xf32>
      tpu.vector_store %arg7[%c0_49, %c0_50, %c0_51], %50 {strides = array<i32>} : memref<1x1x128xf32, #tpu.memory_space<vmem>>, vector<1x1x128xf32>,
      %cst_52 = arith.constant 0.000000e+00 : f32
      %52 = vector.broadcast %cst_52 : f32 to vector<1x256x256xf32>
      %c0_53 = arith.constant 0 : index
      %c0_54 = arith.constant 0 : index
      %c0_55 = arith.constant 0 : index
      %53 = vector.load %arg8[%c0_53, %c0_54, %c0_55] : memref<1x256x256xf32, #tpu.memory_space<vmem>>, vector<1x256x256xf32>
      tpu.vector_store %arg8[%c0_53, %c0_54, %c0_55], %52 {strides = array<i32>} : memref<1x256x256xf32, #tpu.memory_space<vmem>>, vector<1x256x256xf32>,
    } else {
    }
    %c0 = arith.constant 0 : index
    %c0_1 = arith.constant 0 : index
    %3 = vector.load %arg2[%c0, %c0_1] : memref<8x128xf32, #tpu.memory_space<vmem>>, vector<8x128xf32>
    %c0_2 = arith.constant 0 : index
    %c0_3 = arith.constant 0 : index
    %4 = vector.load %arg3[%c0_2, %c0_3] : memref<8x128xf32, #tpu.memory_space<vmem>>, vector<8x128xf32>
    %c0_4 = arith.constant 0 : index
    %c0_5 = arith.constant 0 : index
    %5 = vector.load %arg4[%c0_4, %c0_5] : memref<8x128xf32, #tpu.memory_space<vmem>>, vector<8x128xf32>
    %6 = arith.subf %4, %5 : vector<8x128xf32>
    %7 = math.absf %6 : vector<8x128xf32>
    %cst = arith.constant dense<0.000000e+00> : vector<8xf32>
    %8 = vector.multi_reduction <add>, %7, %cst [1] : vector<8x128xf32> to vector<8xf32>
    %9 = vector.shape_cast %8 : vector<8xf32> to vector<8x1xf32>
    %cst_6 = arith.constant 1.280000e+02 : f32
    %10 = vector.broadcast %cst_6 : f32 to vector<8x1xf32>
    %11 = arith.divf %9, %10 : vector<8x1xf32>
    %cst_7 = arith.constant 1.000000e-03 : f32
    %12 = vector.broadcast %cst_7 : f32 to vector<8x1xf32>
    %13 = arith.addf %11, %12 : vector<8x1xf32>
    %14 = tpu.reciprocal %13 {approx = true} : vector<8x1xf32> -> vector<8x1xf32>
    %15 = vector.broadcast %14 : vector<8x1xf32> to vector<8x128xf32>
    %16 = arith.mulf %7, %15 : vector<8x128xf32>
    %17 = arith.subf %3, %4 : vector<8x128xf32>
    %c0_8 = arith.constant 0 : index
    %c0_9 = arith.constant 0 : index
    %c0_10 = arith.constant 0 : index
    %18 = vector.load %arg5[%c0_8, %c0_9, %c0_10] : memref<1x1x128xf32, #tpu.memory_space<vmem>>, vector<1x1x128xf32>
    %19 = arith.mulf %17, %17 : vector<8x128xf32>
    %20 = arith.mulf %16, %19 : vector<8x128xf32>
    %cst_11 = arith.constant dense<0.000000e+00> : vector<128xf32>
    %21 = vector.multi_reduction <add>, %20, %cst_11 [0] : vector<8x128xf32> to vector<128xf32>
    %22 = vector.shape_cast %21 : vector<128xf32> to vector<1x128xf32>
    %23 = vector.shape_cast %22 : vector<1x128xf32> to vector<1x1x128xf32>
    %24 = arith.addf %18, %23 : vector<1x1x128xf32>
    %c0_12 = arith.constant 0 : index
    %c0_13 = arith.constant 0 : index
    %c0_14 = arith.constant 0 : index
    %25 = vector.load %arg5[%c0_12, %c0_13, %c0_14] : memref<1x1x128xf32, #tpu.memory_space<vmem>>, vector<1x1x128xf32>
    tpu.vector_store %arg5[%c0_12, %c0_13, %c0_14], %24 {strides = array<i32>} : memref<1x1x128xf32, #tpu.memory_space<vmem>>, vector<1x1x128xf32>,
    %c0_15 = arith.constant 0 : index
    %c0_16 = arith.constant 0 : index
    %c0_17 = arith.constant 0 : index
    %26 = vector.load %arg6[%c0_15, %c0_16, %c0_17] : memref<1x1x128xf32, #tpu.memory_space<vmem>>, vector<1x1x128xf32>
    %cst_18 = arith.constant dense<0.000000e+00> : vector<128xf32>
    %27 = vector.multi_reduction <add>, %3, %cst_18 [0] : vector<8x128xf32> to vector<128xf32>
    %28 = vector.shape_cast %27 : vector<128xf32> to vector<1x128xf32>
    %29 = vector.shape_cast %28 : vector<1x128xf32> to vector<1x1x128xf32>
    %30 = arith.addf %26, %29 : vector<1x1x128xf32>
    %c0_19 = arith.constant 0 : index
    %c0_20 = arith.constant 0 : index
    %c0_21 = arith.constant 0 : index
    %31 = vector.load %arg6[%c0_19, %c0_20, %c0_21] : memref<1x1x128xf32, #tpu.memory_space<vmem>>, vector<1x1x128xf32>
    tpu.vector_store %arg6[%c0_19, %c0_20, %c0_21], %30 {strides = array<i32>} : memref<1x1x128xf32, #tpu.memory_space<vmem>>, vector<1x1x128xf32>,
    %c0_22 = arith.constant 0 : index
    %c0_23 = arith.constant 0 : index
    %c0_24 = arith.constant 0 : index
    %32 = vector.load %arg7[%c0_22, %c0_23, %c0_24] : memref<1x1x128xf32, #tpu.memory_space<vmem>>, vector<1x1x128xf32>
    %cst_25 = arith.constant dense<0.000000e+00> : vector<128xf32>
    %33 = vector.multi_reduction <add>, %4, %cst_25 [0] : vector<8x128xf32> to vector<128xf32>
    %34 = vector.shape_cast %33 : vector<128xf32> to vector<1x128xf32>
    %35 = vector.shape_cast %34 : vector<1x128xf32> to vector<1x1x128xf32>
    %36 = arith.addf %32, %35 : vector<1x1x128xf32>
    %c0_26 = arith.constant 0 : index
    %c0_27 = arith.constant 0 : index
    %c0_28 = arith.constant 0 : index
    %37 = vector.load %arg7[%c0_26, %c0_27, %c0_28] : memref<1x1x128xf32, #tpu.memory_space<vmem>>, vector<1x1x128xf32>
    tpu.vector_store %arg7[%c0_26, %c0_27, %c0_28], %36 {strides = array<i32>} : memref<1x1x128xf32, #tpu.memory_space<vmem>>, vector<1x1x128xf32>,
    %c0_29 = arith.constant 0 : index
    %c0_30 = arith.constant 0 : index
    %38 = vector.load %arg2[%c0_29, %c0_30] : memref<8x128xf32, #tpu.memory_space<vmem>>, vector<8x128xf32>
    %c0_31 = arith.constant 0 : index
    %c0_32 = arith.constant 0 : index
    %39 = vector.load %arg3[%c0_31, %c0_32] : memref<8x128xf32, #tpu.memory_space<vmem>>, vector<8x128xf32>
    %40 = tpu.concatenate %38, %39 in 1 : vector<8x128xf32>, vector<8x128xf32> -> vector<8x256xf32>
    %c0_33 = arith.constant 0 : index
    %c0_34 = arith.constant 0 : index
    %c0_35 = arith.constant 0 : index
    %41 = vector.load %arg8[%c0_33, %c0_34, %c0_35] : memref<1x256x256xf32, #tpu.memory_space<vmem>>, vector<1x256x256xf32>
    %cst_36 = arith.constant dense<0.000000e+00> : vector<256x256xf32>
    %42 = tpu.matmul %40, %40, %cst_36 {dimension_numbers = #tpu.dot_dimension_numbers<[0], [0], [1], [1], [0, 1, 1, 1], [], []>} : vector<8x256xf32>, vector<8x256xf32>, vector<256x256xf32> -> vector<256x256xf32>
    %43 = vector.shape_cast %42 : vector<256x256xf32> to vector<1x256x256xf32>
    %44 = arith.addf %41, %43 : vector<1x256x256xf32>
    %c0_37 = arith.constant 0 : index
    %c0_38 = arith.constant 0 : index
    %c0_39 = arith.constant 0 : index
    %45 = vector.load %arg8[%c0_37, %c0_38, %c0_39] : memref<1x256x256xf32, #tpu.memory_space<vmem>>, vector<1x256x256xf32>
    tpu.vector_store %arg8[%c0_37, %c0_38, %c0_39], %44 {strides = array<i32>} : memref<1x256x256xf32, #tpu.memory_space<vmem>>, vector<1x256x256xf32>,
    return
  }
  func.func @transform_0(%arg0: i32, %arg1: i32) -> (i32, i32) {
    %c2_i32 = arith.constant 2 : i32
    %0 = arith.muli %arg0, %c2_i32 : i32
    %1 = arith.addi %0, %arg1 : i32
    %c0_i32 = arith.constant 0 : i32
    %c0_i32_0 = arith.constant 0 : i32
    return %1, %c0_i32 : i32, i32
  }
  func.func @transform_1(%arg0: i32, %arg1: i32) -> (i32, i32) {
    %c2_i32 = arith.constant 2 : i32
    %0 = arith.muli %arg0, %c2_i32 : i32
    %1 = arith.addi %0, %arg1 : i32
    %c0_i32 = arith.constant 0 : i32
    %c0_i32_0 = arith.constant 0 : i32
    return %1, %c0_i32 : i32, i32
  }
  func.func @transform_2(%arg0: i32, %arg1: i32) -> (i32, i32) {
    %c2_i32 = arith.constant 2 : i32
    %0 = arith.muli %arg0, %c2_i32 : i32
    %1 = arith.addi %0, %arg1 : i32
    %c0_i32 = arith.constant 0 : i32
    %c0_i32_0 = arith.constant 0 : i32
    return %1, %c0_i32 : i32, i32
  }
  func.func @transform_3(%arg0: i32, %arg1: i32) -> (i32, i32, i32) {
    %c0_i32 = arith.constant 0 : i32
    %c0_i32_0 = arith.constant 0 : i32
    %c0_i32_1 = arith.constant 0 : i32
    return %arg0, %c0_i32, %c0_i32_0 : i32, i32, i32
  }
  func.func @transform_4(%arg0: i32, %arg1: i32) -> (i32, i32, i32) {
    %c0_i32 = arith.constant 0 : i32
    %c0_i32_0 = arith.constant 0 : i32
    %c0_i32_1 = arith.constant 0 : i32
    return %arg0, %c0_i32, %c0_i32_0 : i32, i32, i32
  }
  func.func @transform_5(%arg0: i32, %arg1: i32) -> (i32, i32, i32) {
    %c0_i32 = arith.constant 0 : i32
    %c0_i32_0 = arith.constant 0 : i32
    %c0_i32_1 = arith.constant 0 : i32
    return %arg0, %c0_i32, %c0_i32_0 : i32, i32, i32
  }
  func.func @transform_6(%arg0: i32, %arg1: i32) -> (i32, i32, i32) {
    %c0_i32 = arith.constant 0 : i32
    %c0_i32_0 = arith.constant 0 : i32
    %c0_i32_1 = arith.constant 0 : i32
    return %arg0, %c0_i32, %c0_i32_0 : i32, i32, i32
  }
}

</mosaic_0001>

<llo_original>
// kernel: tpu_custom_call.1
$region0: #{tpu_custom_call.1}
  #allocation0 [shape = 'u32[]', space=smem, size = 0x4, offset = 0x4, fixed_abs, tag = 'smem constant byte address 0x4 - core index']
  #allocation1 [shape = 'u32[144,128]{1,0:T(1,128)}', space=vmem, size = 0x12000, scoped, tag = 'internal scratch']
  %s0 = inlined_call_operand.hbm [shape: f32[32,128], index: 0, kind: input, shape index: {}]
  %s1 = inlined_call_operand.hbm [shape: f32[32,128], index: 1, kind: input, shape index: {}]
  %s2 = inlined_call_operand.hbm [shape: f32[32,128], index: 2, kind: input, shape index: {}]
  %s3 = inlined_call_operand.hbm [shape: f32[2,1,128], index: 3, kind: output, shape index: {0}]
  %s4 = inlined_call_operand.hbm [shape: f32[2,1,128], index: 4, kind: output, shape index: {1}]
  %s5 = inlined_call_operand.hbm [shape: f32[2,1,128], index: 5, kind: output, shape index: {2}]
  %s6 = inlined_call_operand.hbm [shape: f32[2,256,256], index: 6, kind: output, shape index: {3}]
  %7 = xla_tuple %s3, %s4, %s5, %s6
  %s8 = sld [smem:[#allocation0]]
  $region85: #{tpu_custom_call.1} parent=0
    _
  %s10 = ssub.s32 1, %s8
  %s11 = scalar_select 0, %s10, %s8
  $region1: #{tpu_custom_call.1} parent=0
    #allocation2 [shape = 'u8[8192]{0}', space=vmem, size = 0x2000, scoped, tag = 'input window, operand 0']
    #allocation3 [shape = 's32[2]{0}', space=sflag, size = 0x8, scoped, tag = 'scoped memory for tpu_custom_call.1']
    #allocation4 [shape = 's32[2]{0}', space=sflag, size = 0x8, scoped, tag = 'scoped memory for tpu_custom_call.1']
    #allocation5 [shape = 'u8[8192]{0}', space=vmem, size = 0x2000, scoped, tag = 'input window, operand 1']
    #allocation6 [shape = 's32[2]{0}', space=sflag, size = 0x8, scoped, tag = 'scoped memory for tpu_custom_call.1']
    #allocation7 [shape = 'u8[8192]{0}', space=vmem, size = 0x2000, scoped, tag = 'input window, operand 2']
    #allocation8 [shape = 'u8[1024]{0}', space=vmem, size = 0x400, scoped, tag = 'output window, operand 0']
    #allocation9 [shape = 'u8[1024]{0}', space=vmem, size = 0x400, scoped, tag = 'output window, operand 1']
    #allocation10 [shape = 's32[2]{0}', space=sflag, size = 0x8, scoped, tag = 'scoped memory for tpu_custom_call.1']
    #allocation11 [shape = 'u8[1024]{0}', space=vmem, size = 0x400, scoped, tag = 'output window, operand 2']
    #allocation12 [shape = 'u8[524288]{0}', space=vmem, size = 0x80000, scoped, tag = 'output window, operand 3']
    #allocation13 [shape = 's32[2]{0}', space=sflag, size = 0x8, scoped, tag = 'scoped memory for tpu_custom_call.1']
    %12 = vsyncpa [#allocation3], 0
    %s13 = scalar_lea.sflag [#allocation3], 1
    %14 = vsyncpa %s13, 0
    %15 = vsyncpa [#allocation6], 0
    %s16 = scalar_lea.sflag [#allocation6], 1
    %17 = vsyncpa %s16, 0
    %18 = vsyncpa [#allocation4], 0
    %s19 = scalar_lea.sflag [#allocation4], 1
    %20 = vsyncpa %s19, 0
    %21 = vsyncpa [#allocation10], 0
    %s22 = scalar_lea.sflag [#allocation10], 1
    %23 = vsyncpa %s22, 0
    %24 = vsyncpa [#allocation13], 0
    %s25 = scalar_lea.sflag [#allocation13], 1
    %26 = vsyncpa %s25, 0
    loop: start=0, step=1, limit=6
    $region2: #{tpu_custom_call.1} parent=1 // loop_pre_header
      _
    $region3: #{tpu_custom_call.1} parent=1 // loop_header
      %s28 = sphi 0, %s32
      %p29 = scmp.ge.s32.totalorder %s28, 6
      %s35 = sphi 0, %s47
      %s36 = sphi 0, %s43
      %s37 = sphi 0, %s35
      %s38 = sphi 0, %s36
      %s39 = sphi 0, %s37
      %s40 = sphi 0, %s38
      %s54 = sphi 0, %s56
      %s57 = sphi 0, %s54
      %s58 = sphi 0, %s57
      %s74 = sphi 0, %s58
      %s84 = sphi 0, %s86
      %s87 = sphi 0, %s84
      %s88 = sphi 0, %s87
      %s104 = sphi 0, %s88
      %s114 = sphi 0, %s116
      %s117 = sphi 0, %s114
      %s118 = sphi 0, %s117
      %s134 = sphi 0, %s118
      %s140 = sphi 0, %s142
      %s143 = sphi 0, %s140
      %s144 = sphi 0, %s143
      %s160 = sphi 0, %s144
      %s166 = sphi 0, %s168
      %s169 = sphi 0, %s166
      %s170 = sphi 0, %s169
      %s186 = sphi 0, %s170
      %s192 = sphi 0, %s194
      %s195 = sphi 0, %s192
      %s196 = sphi 0, %s195
      %s212 = sphi 0, %s196
      %s218 = sphi 0, %s220
      %s221 = sphi 0, %s218
      %s222 = sphi 0, %s221
      %s238 = sphi 0, %s222
    $region4: #{tpu_custom_call.1} parent=1 // loop_header_branch
      %31 = sbr.rel (%p29) target = $region8
    $region5: #{tpu_custom_call.1} parent=1 // loop_body
      %s33 = ssub.s32 %s28, 1
      %s34 = ssub.s32 %s28, 2
      %s41 = sadd.s32 1, %s36
      %p42 = scmp.ge.s32.totalorder %s41, 2
      %s43 = scalar_select %p42, 0, %s41
      %s44 = sadd.s32 1, %s35
      %s45 = scalar_select %p42, %s44, %s35
      %p46 = scmp.ge.s32.totalorder %s45, 2
      %s47 = scalar_select %p46, 0, %s45
      %s48 = smul.u32 %s35, 2
      %s49 = sadd.s32 %s48, %s36
      %s50 = smul.u32 %s47, 2
      %s51 = sadd.s32 %s50, %s43
      %s52 = ssub.s32 %s49, %s51
      %p53 = scmp.eq.s32.totalorder %s52, 0
      %s55 = sadd.s32 %s54, 1
      %s56 = scalar_select %p53, %s54, %s55
      %p59 = pneg %p53
      %p60 = scmp.eq.s32.totalorder %s28, 3
      %p61 = por %p59, %p60
      %p62 = scmp.ne.s32.totalorder %s54, %s57
      %p63 = scmp.eq.s32.totalorder %s28, 0
      %p64 = por %p62, %p63
      %p65 = scmp.ne.s32.totalorder %s54, %s57
      %p66 = scmp.eq.s32.totalorder %s33, 3
      %p67 = por %p65, %p66
      %p68 = scmp.ne.s32.totalorder %s57, %s58
      %p69 = scmp.eq.s32.totalorder %s33, 0
      %p70 = por %p68, %p69
      %p71 = scmp.ne.s32.totalorder %s57, %s58
      %p72 = scmp.eq.s32.totalorder %s34, 3
      %p73 = por %p71, %p72
      %p75 = scmp.ne.s32.totalorder %s58, %s74
      %p76 = scmp.eq.s32.totalorder %s34, 0
      %p77 = por %p75, %p76
      %s78 = smul.u32 %s35, 2
      %s79 = sadd.s32 %s78, %s36
      %s80 = smul.u32 %s47, 2
      %s81 = sadd.s32 %s80, %s43
      %s82 = ssub.s32 %s79, %s81
      %p83 = scmp.eq.s32.totalorder %s82, 0
      %s85 = sadd.s32 %s84, 1
      %s86 = scalar_select %p83, %s84, %s85
      %p89 = pneg %p83
      %p90 = scmp.eq.s32.totalorder %s28, 3
      %p91 = por %p89, %p90
      %p92 = scmp.ne.s32.totalorder %s84, %s87
      %p93 = scmp.eq.s32.totalorder %s28, 0
      %p94 = por %p92, %p93
      %p95 = scmp.ne.s32.totalorder %s84, %s87
      %p96 = scmp.eq.s32.totalorder %s33, 3
      %p97 = por %p95, %p96
      %p98 = scmp.ne.s32.totalorder %s87, %s88
      %p99 = scmp.eq.s32.totalorder %s33, 0
      %p100 = por %p98, %p99
      %p101 = scmp.ne.s32.totalorder %s87, %s88
      %p102 = scmp.eq.s32.totalorder %s34, 3
      %p103 = por %p101, %p102
      %p105 = scmp.ne.s32.totalorder %s88, %s104
      %p106 = scmp.eq.s32.totalorder %s34, 0
      %p107 = por %p105, %p106
      %s108 = smul.u32 %s35, 2
      %s109 = sadd.s32 %s108, %s36
      %s110 = smul.u32 %s47, 2
      %s111 = sadd.s32 %s110, %s43
      %s112 = ssub.s32 %s109, %s111
      %p113 = scmp.eq.s32.totalorder %s112, 0
      %s115 = sadd.s32 %s114, 1
      %s116 = scalar_select %p113, %s114, %s115
      %p119 = pneg %p113
      %p120 = scmp.eq.s32.totalorder %s28, 3
      %p121 = por %p119, %p120
      %p122 = scmp.ne.s32.totalorder %s114, %s117
      %p123 = scmp.eq.s32.totalorder %s28, 0
      %p124 = por %p122, %p123
      %p125 = scmp.ne.s32.totalorder %s114, %s117
      %p126 = scmp.eq.s32.totalorder %s33, 3
      %p127 = por %p125, %p126
      %p128 = scmp.ne.s32.totalorder %s117, %s118
      %p129 = scmp.eq.s32.totalorder %s33, 0
      %p130 = por %p128, %p129
      %p131 = scmp.ne.s32.totalorder %s117, %s118
      %p132 = scmp.eq.s32.totalorder %s34, 3
      %p133 = por %p131, %p132
      %p135 = scmp.ne.s32.totalorder %s118, %s134
      %p136 = scmp.eq.s32.totalorder %s34, 0
      %p137 = por %p135, %p136
      %s138 = ssub.s32 %s35, %s47
      %p139 = scmp.eq.s32.totalorder %s138, 0
      %s141 = sadd.s32 %s140, 1
      %s142 = scalar_select %p139, %s140, %s141
      %p145 = pneg %p139
      %p146 = scmp.eq.s32.totalorder %s28, 3
      %p147 = por %p145, %p146
      %p148 = scmp.ne.s32.totalorder %s140, %s143
      %p149 = scmp.eq.s32.totalorder %s28, 0
      %p150 = por %p148, %p149
      %p151 = scmp.ne.s32.totalorder %s140, %s143
      %p152 = scmp.eq.s32.totalorder %s33, 3
      %p153 = por %p151, %p152
      %p154 = scmp.ne.s32.totalorder %s143, %s144
      %p155 = scmp.eq.s32.totalorder %s33, 0
      %p156 = por %p154, %p155
      %p157 = scmp.ne.s32.totalorder %s143, %s144
      %p158 = scmp.eq.s32.totalorder %s34, 3
      %p159 = por %p157, %p158
      %p161 = scmp.ne.s32.totalorder %s144, %s160
      %p162 = scmp.eq.s32.totalorder %s34, 0
      %p163 = por %p161, %p162
      %s164 = ssub.s32 %s35, %s47
      %p165 = scmp.eq.s32.totalorder %s164, 0
      %s167 = sadd.s32 %s166, 1
      %s168 = scalar_select %p165, %s166, %s167
      %p171 = pneg %p165
      %p172 = scmp.eq.s32.totalorder %s28, 3
      %p173 = por %p171, %p172
      %p174 = scmp.ne.s32.totalorder %s166, %s169
      %p175 = scmp.eq.s32.totalorder %s28, 0
      %p176 = por %p174, %p175
      %p177 = scmp.ne.s32.totalorder %s166, %s169
      %p178 = scmp.eq.s32.totalorder %s33, 3
      %p179 = por %p177, %p178
      %p180 = scmp.ne.s32.totalorder %s169, %s170
      %p181 = scmp.eq.s32.totalorder %s33, 0
      %p182 = por %p180, %p181
      %p183 = scmp.ne.s32.totalorder %s169, %s170
      %p184 = scmp.eq.s32.totalorder %s34, 3
      %p185 = por %p183, %p184
      %p187 = scmp.ne.s32.totalorder %s170, %s186
      %p188 = scmp.eq.s32.totalorder %s34, 0
      %p189 = por %p187, %p188
      %s190 = ssub.s32 %s35, %s47
      %p191 = scmp.eq.s32.totalorder %s190, 0
      %s193 = sadd.s32 %s192, 1
      %s194 = scalar_select %p191, %s192, %s193
      %p197 = pneg %p191
      %p198 = scmp.eq.s32.totalorder %s28, 3
      %p199 = por %p197, %p198
      %p200 = scmp.ne.s32.totalorder %s192, %s195
      %p201 = scmp.eq.s32.totalorder %s28, 0
      %p202 = por %p200, %p201
      %p203 = scmp.ne.s32.totalorder %s192, %s195
      %p204 = scmp.eq.s32.totalorder %s33, 3
      %p205 = por %p203, %p204
      %p206 = scmp.ne.s32.totalorder %s195, %s196
      %p207 = scmp.eq.s32.totalorder %s33, 0
      %p208 = por %p206, %p207
      %p209 = scmp.ne.s32.totalorder %s195, %s196
      %p210 = scmp.eq.s32.totalorder %s34, 3
      %p211 = por %p209, %p210
      %p213 = scmp.ne.s32.totalorder %s196, %s212
      %p214 = scmp.eq.s32.totalorder %s34, 0
      %p215 = por %p213, %p214
      %s216 = ssub.s32 %s35, %s47
      %p217 = scmp.eq.s32.totalorder %s216, 0
      %s219 = sadd.s32 %s218, 1
      %s220 = scalar_select %p217, %s218, %s219
      %p223 = pneg %p217
      %p224 = scmp.eq.s32.totalorder %s28, 3
      %p225 = por %p223, %p224
      %p226 = scmp.ne.s32.totalorder %s218, %s221
      %p227 = scmp.eq.s32.totalorder %s28, 0
      %p228 = por %p226, %p227
      %p229 = scmp.ne.s32.totalorder %s218, %s221
      %p230 = scmp.eq.s32.totalorder %s33, 3
      %p231 = por %p229, %p230
      %p232 = scmp.ne.s32.totalorder %s221, %s222
      %p233 = scmp.eq.s32.totalorder %s33, 0
      %p234 = por %p232, %p233
      %p235 = scmp.ne.s32.totalorder %s221, %s222
      %p236 = scmp.eq.s32.totalorder %s34, 3
      %p237 = por %p235, %p236
      %p239 = scmp.ne.s32.totalorder %s222, %s238
      %p240 = scmp.eq.s32.totalorder %s34, 0
      %p241 = por %p239, %p240
      %p242 = scmp.le.s32.totalorder 1, %s28
      %p243 = scmp.lt.s32.totalorder %s28, 5
      %p244 = pnand %p242, %p243
      %p245 = pneg %p244
      // Predicated region
      $region9: #{tpu_custom_call.1} parent=5 // pred_check
        _
      $region10: #{tpu_custom_call.1} parent=5 // pred_check_branch
        %247 = sbr.rel (%p244) target = $region12
      $region11: #{tpu_custom_call.1} parent=5 // pred_region
        %s248 = ssub.s32 %s28, 1
      $region12: #{tpu_custom_call.1} parent=5 // pred_fallthru
        _
      %p249 = scmp.lt.s32.totalorder %s28, 4
      // Predicated region
      $region13: #{tpu_custom_call.1} parent=5 // pred_check
        %p250 = pneg %p249
      $region14: #{tpu_custom_call.1} parent=5 // pred_check_branch
        %252 = sbr.rel (%p250) target = $region16
      $region15: #{tpu_custom_call.1} parent=5 // pred_region
        // Predicated region
        $region17: #{tpu_custom_call.1} parent=15 // pred_check
          %p253 = pneg %p64
        $region18: #{tpu_custom_call.1} parent=15 // pred_check_branch
          %255 = sbr.rel (%p253) target = $region20
        $region19: #{tpu_custom_call.1} parent=15 // pred_region
          %s256 = sand.u32 %s54, 1
          %s257 = scalar_lea.sflag [#allocation3], %s256
          %s258 = sand.u32 %s54, 1
          %s259 = smul.addr %s258, 8
          %s260 = scalar_lea.vmem [#allocation2], %s259
          %s261 = smul.u32 %s35, 2
          %s262 = sadd.s32 %s261, %s36
          %s264 = ssub.s32 128, 128
          %265 = vsyncadd %s257, %s264
          %s266 = smul.addr %s262, 128
          %s267 = scalar_lea.hbm %s0, %s266
          %s269 = sshll.u32 %s260, 4
          %s270 = int_to_ptr.vmem [resolvable:$true] %s269
          %272 = dma.hbm_to_vmem [thread:$0]  %s267, 128, %s270, %s257
        $region20: #{tpu_custom_call.1} parent=15 // pred_fallthru
          _
        // Predicated region
        $region21: #{tpu_custom_call.1} parent=15 // pred_check
          %p273 = pneg %p94
        $region22: #{tpu_custom_call.1} parent=15 // pred_check_branch
          %275 = sbr.rel (%p273) target = $region24
        $region23: #{tpu_custom_call.1} parent=15 // pred_region
          %s276 = sand.u32 %s28, 1
          %s277 = scalar_lea.sflag [#allocation6], %s276
          %s278 = sand.u32 %s84, 1
          %s279 = smul.addr %s278, 8
          %s280 = scalar_lea.vmem [#allocation5], %s279
          %s281 = smul.u32 %s35, 2
          %s282 = sadd.s32 %s281, %s36
          %s284 = ssub.s32 128, 128
          %285 = vsyncadd %s277, %s284
          %s286 = smul.addr %s282, 128
          %s287 = scalar_lea.hbm %s1, %s286
          %s289 = sshll.u32 %s280, 4
          %s290 = int_to_ptr.vmem [resolvable:$true] %s289
          %292 = dma.hbm_to_vmem [thread:$0]  %s287, 128, %s290, %s277
        $region24: #{tpu_custom_call.1} parent=15 // pred_fallthru
          _
        // Predicated region
        $region25: #{tpu_custom_call.1} parent=15 // pred_check
          %p293 = pneg %p124
        $region26: #{tpu_custom_call.1} parent=15 // pred_check_branch
          %295 = sbr.rel (%p293) target = $region28
        $region27: #{tpu_custom_call.1} parent=15 // pred_region
          %s296 = sand.u32 %s28, 1
          %s297 = scalar_lea.sflag [#allocation6], %s296
          %s298 = sand.u32 %s114, 1
          %s299 = smul.addr %s298, 8
          %s300 = scalar_lea.vmem [#allocation7], %s299
          %s301 = smul.u32 %s35, 2
          %s302 = sadd.s32 %s301, %s36
          %s304 = ssub.s32 128, 128
          %305 = vsyncadd %s297, %s304
          %s306 = smul.addr %s302, 128
          %s307 = scalar_lea.hbm %s2, %s306
          %s309 = sshll.u32 %s300, 4
          %s310 = int_to_ptr.vmem [resolvable:$true] %s309
          %312 = dma.hbm_to_vmem [thread:$0]  %s307, 128, %s310, %s297
        $region28: #{tpu_custom_call.1} parent=15 // pred_fallthru
          _
      $region16: #{tpu_custom_call.1} parent=5 // pred_fallthru
        _
      %p313 = scmp.le.s32.totalorder 1, %s28
      %p314 = scmp.lt.s32.totalorder %s28, 5
      %p315 = pnand %p313, %p314
      %p316 = pneg %p315
      // Predicated region
      $region29: #{tpu_custom_call.1} parent=5 // pred_check
        _
      $region30: #{tpu_custom_call.1} parent=5 // pred_check_branch
        %318 = sbr.rel (%p315) target = $region32
      $region31: #{tpu_custom_call.1} parent=5 // pred_region
        %s319 = ssub.s32 %s28, 1
        %s320 = sand.u32 %s57, 1
        %s321 = scalar_lea.sflag [#allocation3], %s320
        %s322 = sand.u32 %s57, 1
        %s323 = smul.addr %s322, 8
        %s324 = scalar_lea.vmem [#allocation2], %s323
        // Predicated region
        $region33: #{tpu_custom_call.1} parent=31 // pred_check
          %p325 = pneg %p70
        $region34: #{tpu_custom_call.1} parent=31 // pred_check_branch
          %327 = sbr.rel (%p325) target = $region36
        $region35: #{tpu_custom_call.1} parent=31 // pred_region
          %328 = dma.done %s321, 128
        $region36: #{tpu_custom_call.1} parent=31 // pred_fallthru
          _
        %s329 = sand.u32 %s33, 1
        %s330 = scalar_lea.sflag [#allocation6], %s329
        %s331 = sand.u32 %s87, 1
        %s332 = smul.addr %s331, 8
        %s333 = scalar_lea.vmem [#allocation5], %s332
        // Predicated region
        $region37: #{tpu_custom_call.1} parent=31 // pred_check
          %p334 = pneg %p100
        $region38: #{tpu_custom_call.1} parent=31 // pred_check_branch
          %336 = sbr.rel (%p334) target = $region40
        $region39: #{tpu_custom_call.1} parent=31 // pred_region
          %337 = dma.done %s330, 128
        $region40: #{tpu_custom_call.1} parent=31 // pred_fallthru
          _
        %s338 = sand.u32 %s33, 1
        %s339 = scalar_lea.sflag [#allocation6], %s338
        %s340 = sand.u32 %s117, 1
        %s341 = smul.addr %s340, 8
        %s342 = scalar_lea.vmem [#allocation7], %s341
        // Predicated region
        $region41: #{tpu_custom_call.1} parent=31 // pred_check
          %p343 = pneg %p130
        $region42: #{tpu_custom_call.1} parent=31 // pred_check_branch
          %345 = sbr.rel (%p343) target = $region44
        $region43: #{tpu_custom_call.1} parent=31 // pred_region
          %346 = dma.done %s339, 128
        $region44: #{tpu_custom_call.1} parent=31 // pred_fallthru
          _
        %s347 = sand.u32 %s57, 1
        %s348 = scalar_lea.sflag [#allocation3], %s347
        %s349 = sand.u32 %s57, 1
        %s350 = smul.addr %s349, 8
        %s351 = scalar_lea.vmem [#allocation2], %s350
        %p352 = pneg %p70
        %p353 = pneg %p67
        %s354 = sand.u32 %s33, 1
        %s355 = scalar_lea.sflag [#allocation6], %s354
        %s356 = sand.u32 %s87, 1
        %s357 = smul.addr %s356, 8
        %s358 = scalar_lea.vmem [#allocation5], %s357
        %p359 = pneg %p100
        %p360 = pneg %p97
        %s361 = sand.u32 %s33, 1
        %s362 = scalar_lea.sflag [#allocation6], %s361
        %s363 = sand.u32 %s117, 1
        %s364 = smul.addr %s363, 8
        %s365 = scalar_lea.vmem [#allocation7], %s364
        %p366 = pneg %p130
        %p367 = pneg %p127
        %p368 = pneg %p156
        %p369 = pneg %p153
        %s370 = sand.u32 %s143, 1
        %s371 = scalar_lea.sflag [#allocation4], %s370
        %s372 = sand.u32 %s143, 1
        %s373 = scalar_lea.vmem [#allocation8], %s372
        %p374 = pneg %p182
        %p375 = pneg %p179
        %s376 = sand.u32 %s33, 1
        %s377 = scalar_lea.sflag [#allocation10], %s376
        %s378 = sand.u32 %s169, 1
        %s379 = scalar_lea.vmem [#allocation9], %s378
        %p380 = pneg %p208
        %p381 = pneg %p205
        %s382 = sand.u32 %s33, 1
        %s383 = scalar_lea.sflag [#allocation10], %s382
        %s384 = sand.u32 %s195, 1
        %s385 = scalar_lea.vmem [#allocation11], %s384
        %p386 = pneg %p234
        %p387 = pneg %p231
        %s388 = sand.u32 %s221, 1
        %s389 = scalar_lea.sflag [#allocation13], %s388
        %s390 = sand.u32 %s221, 1
        %s391 = smul.addr %s390, 512
        %s392 = scalar_lea.vmem [#allocation12], %s391
        %s393 = smul.u32 %s37, 2
        %s394 = sadd.s32 %s393, %s38
        %s395 = smul.u32 %s37, 2
        %s396 = sadd.s32 %s395, %s38
        %s397 = smul.u32 %s37, 2
        %s398 = sadd.s32 %s397, %s38
        %p399 = scmp.eq.s32.totalorder %s38, 0
        // Predicated region
        $region45: #{tpu_custom_call.1} parent=31 // pred_check
          %p400 = pneg %p399
        $region46: #{tpu_custom_call.1} parent=31 // pred_check_branch
          %402 = sbr.rel (%p400) target = $region48
        $region47: #{tpu_custom_call.1} parent=31 // pred_region
          %403 = vst [vmem:[%s373] sm:$0x1] 0.0
          %404 = vst [vmem:[%s379] sm:$0x1] 0.0
          %405 = vst [vmem:[%s385] sm:$0x1] 0.0
          %406 = vst [vmem:[%s392] sm:$0xff] 0.0
          %407 = vst [vmem:[%s392 + $0x8] sm:$0xff] 0.0
          %408 = vst [vmem:[%s392 + $0x10] sm:$0xff] 0.0
          %409 = vst [vmem:[%s392 + $0x18] sm:$0xff] 0.0
          %410 = vst [vmem:[%s392 + $0x20] sm:$0xff] 0.0
          %411 = vst [vmem:[%s392 + $0x28] sm:$0xff] 0.0
          %412 = vst [vmem:[%s392 + $0x30] sm:$0xff] 0.0
          %413 = vst [vmem:[%s392 + $0x38] sm:$0xff] 0.0
          %414 = vst [vmem:[%s392 + $0x40] sm:$0xff] 0.0
          %415 = vst [vmem:[%s392 + $0x48] sm:$0xff] 0.0
          %416 = vst [vmem:[%s392 + $0x50] sm:$0xff] 0.0
          %417 = vst [vmem:[%s392 + $0x58] sm:$0xff] 0.0
          %418 = vst [vmem:[%s392 + $0x60] sm:$0xff] 0.0
          %419 = vst [vmem:[%s392 + $0x68] sm:$0xff] 0.0
          %420 = vst [vmem:[%s392 + $0x70] sm:$0xff] 0.0
          %421 = vst [vmem:[%s392 + $0x78] sm:$0xff] 0.0
          %422 = vst [vmem:[%s392 + $0x80] sm:$0xff] 0.0
          %423 = vst [vmem:[%s392 + $0x88] sm:$0xff] 0.0
          %424 = vst [vmem:[%s392 + $0x90] sm:$0xff] 0.0
          %425 = vst [vmem:[%s392 + $0x98] sm:$0xff] 0.0
          %426 = vst [vmem:[%s392 + $0xa0] sm:$0xff] 0.0
          %427 = vst [vmem:[%s392 + $0xa8] sm:$0xff] 0.0
          %428 = vst [vmem:[%s392 + $0xb0] sm:$0xff] 0.0
          %429 = vst [vmem:[%s392 + $0xb8] sm:$0xff] 0.0
          %430 = vst [vmem:[%s392 + $0xc0] sm:$0xff] 0.0
          %431 = vst [vmem:[%s392 + $0xc8] sm:$0xff] 0.0
          %432 = vst [vmem:[%s392 + $0xd0] sm:$0xff] 0.0
          %433 = vst [vmem:[%s392 + $0xd8] sm:$0xff] 0.0
          %434 = vst [vmem:[%s392 + $0xe0] sm:$0xff] 0.0
          %435 = vst [vmem:[%s392 + $0xe8] sm:$0xff] 0.0
          %436 = vst [vmem:[%s392 + $0xf0] sm:$0xff] 0.0
          %437 = vst [vmem:[%s392 + $0xf8] sm:$0xff] 0.0
          %438 = vst [vmem:[%s392 + $0x100] sm:$0xff] 0.0
          %439 = vst [vmem:[%s392 + $0x108] sm:$0xff] 0.0
          %440 = vst [vmem:[%s392 + $0x110] sm:$0xff] 0.0
          %441 = vst [vmem:[%s392 + $0x118] sm:$0xff] 0.0
          %442 = vst [vmem:[%s392 + $0x120] sm:$0xff] 0.0
          %443 = vst [vmem:[%s392 + $0x128] sm:$0xff] 0.0
          %444 = vst [vmem:[%s392 + $0x130] sm:$0xff] 0.0
          %445 = vst [vmem:[%s392 + $0x138] sm:$0xff] 0.0
          %446 = vst [vmem:[%s392 + $0x140] sm:$0xff] 0.0
          %447 = vst [vmem:[%s392 + $0x148] sm:$0xff] 0.0
          %448 = vst [vmem:[%s392 + $0x150] sm:$0xff] 0.0
          %449 = vst [vmem:[%s392 + $0x158] sm:$0xff] 0.0
          %450 = vst [vmem:[%s392 + $0x160] sm:$0xff] 0.0
          %451 = vst [vmem:[%s392 + $0x168] sm:$0xff] 0.0
          %452 = vst [vmem:[%s392 + $0x170] sm:$0xff] 0.0
          %453 = vst [vmem:[%s392 + $0x178] sm:$0xff] 0.0
          %454 = vst [vmem:[%s392 + $0x180] sm:$0xff] 0.0
          %455 = vst [vmem:[%s392 + $0x188] sm:$0xff] 0.0
          %456 = vst [vmem:[%s392 + $0x190] sm:$0xff] 0.0
          %457 = vst [vmem:[%s392 + $0x198] sm:$0xff] 0.0
          %458 = vst [vmem:[%s392 + $0x1a0] sm:$0xff] 0.0
          %459 = vst [vmem:[%s392 + $0x1a8] sm:$0xff] 0.0
          %460 = vst [vmem:[%s392 + $0x1b0] sm:$0xff] 0.0
          %461 = vst [vmem:[%s392 + $0x1b8] sm:$0xff] 0.0
          %462 = vst [vmem:[%s392 + $0x1c0] sm:$0xff] 0.0
          %463 = vst [vmem:[%s392 + $0x1c8] sm:$0xff] 0.0
          %464 = vst [vmem:[%s392 + $0x1d0] sm:$0xff] 0.0
          %465 = vst [vmem:[%s392 + $0x1d8] sm:$0xff] 0.0
          %466 = vst [vmem:[%s392 + $0x1e0] sm:$0xff] 0.0
          %467 = vst [vmem:[%s392 + $0x1e8] sm:$0xff] 0.0
          %468 = vst [vmem:[%s392 + $0x1f0] sm:$0xff] 0.0
          %469 = vst [vmem:[%s392 + $0x1f8] sm:$0xff] 0.0
        $region48: #{tpu_custom_call.1} parent=31 // pred_fallthru
          _
        %v470 = vld [vmem:[%s324] sm:$0xff]
        %v471 = vld [vmem:[%s333] sm:$0xff]
        %v472 = vld [vmem:[%s342] sm:$0xff]
        %v473 = vsub.f32 %v471, %v472
        %v474 = vand.u32 2147483647, %v473
        %475 = vadd.xlane.f32.xlu0 %v474
        %v476 = vpop.xlane.xlu0 %475
        %v477 = vrcp.pop 128.0
        %v478 = vmul.f32 %v476, %v477
        %v479 = vadd.f32 %v478, 0.001
        %v480 = vrcp.pop %v479
        %v481 = vmul.f32 %v474, %v480
        %v482 = vsub.f32 %v470, %v471
        %v483 = vld [vmem:[%s373] sm:$0x1]
        %v484 = vmul.f32 %v482, %v482
        %v485 = vmul.f32 %v481, %v484
        %v486 = vrot.slane %v485, 4
        %v487 = vadd.f32 %v485, %v486
        %v488 = vrot.slane %v487, 2
        %v489 = vadd.f32 %v487, %v488
        %v490 = vrot.slane %v489, 1
        %v491 = vadd.f32 %v489, %v490
        %v492 = vadd.f32 %v483, %v491
        %493 = vst [vmem:[%s373] sm:$0x1] %v492
        %v494 = vld [vmem:[%s379] sm:$0x1]
        %v495 = vrot.slane %v470, 4
        %v496 = vadd.f32 %v470, %v495
        %v497 = vrot.slane %v496, 2
        %v498 = vadd.f32 %v496, %v497
        %v499 = vrot.slane %v498, 1
        %v500 = vadd.f32 %v498, %v499
        %v501 = vadd.f32 %v494, %v500
        %502 = vst [vmem:[%s379] sm:$0x1] %v501
        %v503 = vld [vmem:[%s385] sm:$0x1]
        %v504 = vrot.slane %v471, 4
        %v505 = vadd.f32 %v471, %v504
        %v506 = vrot.slane %v505, 2
        %v507 = vadd.f32 %v505, %v506
        %v508 = vrot.slane %v507, 1
        %v509 = vadd.f32 %v507, %v508
        %v510 = vadd.f32 %v503, %v509
        %511 = vst [vmem:[%s385] sm:$0x1] %v510
        %v512 = vld [vmem:[%s324] sm:$0xff]
        %v513 = vld [vmem:[%s333] sm:$0xff]
        %v514 = vld [vmem:[%s392] sm:$0xff]
        %v515 = vld [vmem:[%s392 + $0x8] sm:$0xff]
        %v516 = vld [vmem:[%s392 + $0x10] sm:$0xff]
        %v517 = vld [vmem:[%s392 + $0x18] sm:$0xff]
        %v518 = vld [vmem:[%s392 + $0x20] sm:$0xff]
        %v519 = vld [vmem:[%s392 + $0x28] sm:$0xff]
        %v520 = vld [vmem:[%s392 + $0x30] sm:$0xff]
        %v521 = vld [vmem:[%s392 + $0x38] sm:$0xff]
        %v522 = vld [vmem:[%s392 + $0x40] sm:$0xff]
        %v523 = vld [vmem:[%s392 + $0x48] sm:$0xff]
        %v524 = vld [vmem:[%s392 + $0x50] sm:$0xff]
        %v525 = vld [vmem:[%s392 + $0x58] sm:$0xff]
        %v526 = vld [vmem:[%s392 + $0x60] sm:$0xff]
        %v527 = vld [vmem:[%s392 + $0x68] sm:$0xff]
        %v528 = vld [vmem:[%s392 + $0x70] sm:$0xff]
        %v529 = vld [vmem:[%s392 + $0x78] sm:$0xff]
        %v530 = vld [vmem:[%s392 + $0x80] sm:$0xff]
        %v531 = vld [vmem:[%s392 + $0x88] sm:$0xff]
        %v532 = vld [vmem:[%s392 + $0x90] sm:$0xff]
        %v533 = vld [vmem:[%s392 + $0x98] sm:$0xff]
        %v534 = vld [vmem:[%s392 + $0xa0] sm:$0xff]
        %v535 = vld [vmem:[%s392 + $0xa8] sm:$0xff]
        %v536 = vld [vmem:[%s392 + $0xb0] sm:$0xff]
        %v537 = vld [vmem:[%s392 + $0xb8] sm:$0xff]
        %v538 = vld [vmem:[%s392 + $0xc0] sm:$0xff]
        %v539 = vld [vmem:[%s392 + $0xc8] sm:$0xff]
        %v540 = vld [vmem:[%s392 + $0xd0] sm:$0xff]
        %v541 = vld [vmem:[%s392 + $0xd8] sm:$0xff]
        %v542 = vld [vmem:[%s392 + $0xe0] sm:$0xff]
        %v543 = vld [vmem:[%s392 + $0xe8] sm:$0xff]
        %v544 = vld [vmem:[%s392 + $0xf0] sm:$0xff]
        %v545 = vld [vmem:[%s392 + $0xf8] sm:$0xff]
        %v546 = vld [vmem:[%s392 + $0x100] sm:$0xff]
        %v547 = vld [vmem:[%s392 + $0x108] sm:$0xff]
        %v548 = vld [vmem:[%s392 + $0x110] sm:$0xff]
        %v549 = vld [vmem:[%s392 + $0x118] sm:$0xff]
        %v550 = vld [vmem:[%s392 + $0x120] sm:$0xff]
        %v551 = vld [vmem:[%s392 + $0x128] sm:$0xff]
        %v552 = vld [vmem:[%s392 + $0x130] sm:$0xff]
        %v553 = vld [vmem:[%s392 + $0x138] sm:$0xff]
        %v554 = vld [vmem:[%s392 + $0x140] sm:$0xff]
        %v555 = vld [vmem:[%s392 + $0x148] sm:$0xff]
        %v556 = vld [vmem:[%s392 + $0x150] sm:$0xff]
        %v557 = vld [vmem:[%s392 + $0x158] sm:$0xff]
        %v558 = vld [vmem:[%s392 + $0x160] sm:$0xff]
        %v559 = vld [vmem:[%s392 + $0x168] sm:$0xff]
        %v560 = vld [vmem:[%s392 + $0x170] sm:$0xff]
        %v561 = vld [vmem:[%s392 + $0x178] sm:$0xff]
        %v562 = vld [vmem:[%s392 + $0x180] sm:$0xff]
        %v563 = vld [vmem:[%s392 + $0x188] sm:$0xff]
        %v564 = vld [vmem:[%s392 + $0x190] sm:$0xff]
        %v565 = vld [vmem:[%s392 + $0x198] sm:$0xff]
        %v566 = vld [vmem:[%s392 + $0x1a0] sm:$0xff]
        %v567 = vld [vmem:[%s392 + $0x1a8] sm:$0xff]
        %v568 = vld [vmem:[%s392 + $0x1b0] sm:$0xff]
        %v569 = vld [vmem:[%s392 + $0x1b8] sm:$0xff]
        %v570 = vld [vmem:[%s392 + $0x1c0] sm:$0xff]
        %v571 = vld [vmem:[%s392 + $0x1c8] sm:$0xff]
        %v572 = vld [vmem:[%s392 + $0x1d0] sm:$0xff]
        %v573 = vld [vmem:[%s392 + $0x1d8] sm:$0xff]
        %v574 = vld [vmem:[%s392 + $0x1e0] sm:$0xff]
        %v575 = vld [vmem:[%s392 + $0x1e8] sm:$0xff]
        %v576 = vld [vmem:[%s392 + $0x1f0] sm:$0xff]
        %v577 = vld [vmem:[%s392 + $0x1f8] sm:$0xff]
        %578 = vxpose.xlu0.b32.start [1/16] %v512, 128
        %579 = vxpose.xlu0.b32.cont [2/16] 0.0, 128
        %580 = vxpose.xlu0.b32.cont [3/16] 0.0, 128
        %581 = vxpose.xlu0.b32.cont [4/16] 0.0, 128
        %582 = vxpose.xlu0.b32.cont [5/16] 0.0, 128
        %583 = vxpose.xlu0.b32.cont [6/16] 0.0, 128
        %584 = vxpose.xlu0.b32.cont [7/16] 0.0, 128
        %585 = vxpose.xlu0.b32.cont [8/16] 0.0, 128
        %586 = vxpose.xlu0.b32.cont [9/16] 0.0, 128
        %587 = vxpose.xlu0.b32.cont [10/16] 0.0, 128
        %588 = vxpose.xlu0.b32.cont [11/16] 0.0, 128
        %589 = vxpose.xlu0.b32.cont [12/16] 0.0, 128
        %590 = vxpose.xlu0.b32.cont [13/16] 0.0, 128
        %591 = vxpose.xlu0.b32.cont [14/16] 0.0, 128
        %592 = vxpose.xlu0.b32.cont [15/16] 0.0, 128
        %593 = vxpose.xlu0.b32.end [16/16] 0.0, 128
        %v594 = vpop.trf.xlu0
        %v595 = vpop.trf.xlu0
        %v596 = vpop.trf.xlu0
        %v597 = vpop.trf.xlu0
        %v598 = vpop.trf.xlu0
        %v599 = vpop.trf.xlu0
        %v600 = vpop.trf.xlu0
        %v601 = vpop.trf.xlu0
        %v602 = vpop.trf.xlu0
        %v603 = vpop.trf.xlu0
        %v604 = vpop.trf.xlu0
        %v605 = vpop.trf.xlu0
        %v606 = vpop.trf.xlu0
        %v607 = vpop.trf.xlu0
        %v608 = vpop.trf.xlu0
        %v609 = vpop.trf.xlu0
        %610 = vxpose.xlu0.b32.start [1/16] %v513, 128
        %611 = vxpose.xlu0.b32.cont [2/16] 0.0, 128
        %612 = vxpose.xlu0.b32.cont [3/16] 0.0, 128
        %613 = vxpose.xlu0.b32.cont [4/16] 0.0, 128
        %614 = vxpose.xlu0.b32.cont [5/16] 0.0, 128
        %615 = vxpose.xlu0.b32.cont [6/16] 0.0, 128
        %616 = vxpose.xlu0.b32.cont [7/16] 0.0, 128
        %617 = vxpose.xlu0.b32.cont [8/16] 0.0, 128
        %618 = vxpose.xlu0.b32.cont [9/16] 0.0, 128
        %619 = vxpose.xlu0.b32.cont [10/16] 0.0, 128
        %620 = vxpose.xlu0.b32.cont [11/16] 0.0, 128
        %621 = vxpose.xlu0.b32.cont [12/16] 0.0, 128
        %622 = vxpose.xlu0.b32.cont [13/16] 0.0, 128
        %623 = vxpose.xlu0.b32.cont [14/16] 0.0, 128
        %624 = vxpose.xlu0.b32.cont [15/16] 0.0, 128
        %625 = vxpose.xlu0.b32.end [16/16] 0.0, 128
        %v626 = vpop.trf.xlu0
        %v627 = vpop.trf.xlu0
        %v628 = vpop.trf.xlu0
        %v629 = vpop.trf.xlu0
        %v630 = vpop.trf.xlu0
        %v631 = vpop.trf.xlu0
        %v632 = vpop.trf.xlu0
        %v633 = vpop.trf.xlu0
        %v634 = vpop.trf.xlu0
        %v635 = vpop.trf.xlu0
        %v636 = vpop.trf.xlu0
        %v637 = vpop.trf.xlu0
        %v638 = vpop.trf.xlu0
        %v639 = vpop.trf.xlu0
        %v640 = vpop.trf.xlu0
        %v641 = vpop.trf.xlu0
        %vm642 = vcmask 64512
        %v644 = vsel %vm642, %v594, 0
        %v647 = vsel %vm642, %v595, 0
        %v650 = vsel %vm642, %v596, 0
        %v653 = vsel %vm642, %v597, 0
        %v656 = vsel %vm642, %v598, 0
        %v659 = vsel %vm642, %v599, 0
        %v662 = vsel %vm642, %v600, 0
        %v665 = vsel %vm642, %v601, 0
        %v668 = vsel %vm642, %v602, 0
        %v671 = vsel %vm642, %v603, 0
        %v674 = vsel %vm642, %v604, 0
        %v677 = vsel %vm642, %v605, 0
        %v680 = vsel %vm642, %v606, 0
        %v683 = vsel %vm642, %v607, 0
        %v686 = vsel %vm642, %v608, 0
        %v689 = vsel %vm642, %v609, 0
        %v692 = vsel %vm642, %v626, 0
        %v695 = vsel %vm642, %v627, 0
        %v698 = vsel %vm642, %v628, 0
        %v701 = vsel %vm642, %v629, 0
        %v704 = vsel %vm642, %v630, 0
        %v707 = vsel %vm642, %v631, 0
        %v710 = vsel %vm642, %v632, 0
        %v713 = vsel %vm642, %v633, 0
        %v716 = vsel %vm642, %v634, 0
        %v719 = vsel %vm642, %v635, 0
        %v722 = vsel %vm642, %v636, 0
        %v725 = vsel %vm642, %v637, 0
        %v728 = vsel %vm642, %v638, 0
        %v731 = vsel %vm642, %v639, 0
        %v734 = vsel %vm642, %v640, 0
        %v737 = vsel %vm642, %v641, 0
        %739 = vmatprep.subr.mxu0 %v513
        %740 = vmatpush1.msra.mxu0 %v512
        %741 = vmatprep.subr.mxu0 0.0
        %742 = vmatpush1.msra.mxu0 0.0
        %743 = vmatprep.subr.mxu0 0.0
        %744 = vmatpush1.msra.mxu0 0.0
        %745 = vmatprep.subr.mxu0 0.0
        %746 = vmatpush1.msra.mxu0 0.0
        %747 = vmatprep.subr.mxu0 0.0
        %748 = vmatpush1.msra.mxu0 0.0
        %749 = vmatprep.subr.mxu0 0.0
        %750 = vmatpush1.msra.mxu0 0.0
        %751 = vmatprep.subr.mxu0 0.0
        %752 = vmatpush1.msra.mxu0 0.0
        %753 = vmatprep.subr.mxu0 0.0
        %754 = vmatpush1.msra.mxu0 0.0
        %755 = vmatprep.subr.mxu0 0.0
        %756 = vmatpush1.msra.mxu0 0.0
        %757 = vmatprep.subr.mxu0 0.0
        %758 = vmatpush1.msra.mxu0 0.0
        %759 = vmatprep.subr.mxu0 0.0
        %760 = vmatpush1.msra.mxu0 0.0
        %761 = vmatprep.subr.mxu0 0.0
        %762 = vmatpush1.msra.mxu0 0.0
        %763 = vmatprep.subr.mxu0 0.0
        %764 = vmatpush1.msra.mxu0 0.0
        %765 = vmatprep.subr.mxu0 0.0
        %766 = vmatpush1.msra.mxu0 0.0
        %767 = vmatprep.subr.mxu0 0.0
        %768 = vmatpush1.msra.mxu0 0.0
        %769 = vmatprep.subr.mxu0 0.0
        %770 = vmatpush1.msra.mxu0 0.0
        %771 = vmatprep.subr.mxu0 0.0
        %772 = vmatpush1.msra.mxu0 0.0
        %773 = vmatprep.subr.mxu0 0.0
        %774 = vmatpush1.msra.mxu0 0.0
        %775 = vmatprep.subr.mxu0 0.0
        %776 = vmatpush1.msra.mxu0 0.0
        %777 = vmatprep.subr.mxu0 0.0
        %778 = vmatpush1.msra.mxu0 0.0
        %779 = vmatprep.subr.mxu0 0.0
        %780 = vmatpush1.msra.mxu0 0.0
        %781 = vmatprep.subr.mxu0 0.0
        %782 = vmatpush1.msra.mxu0 0.0
        %783 = vmatprep.subr.mxu0 0.0
        %784 = vmatpush1.msra.mxu0 0.0
        %785 = vmatprep.subr.mxu0 0.0
        %786 = vmatpush1.msra.mxu0 0.0
        %787 = vmatprep.subr.mxu0 0.0
        %788 = vmatpush1.msra.mxu0 0.0
        %789 = vmatprep.subr.mxu0 0.0
        %790 = vmatpush1.msra.mxu0 0.0
        %791 = vmatprep.subr.mxu0 0.0
        %792 = vmatpush1.msra.mxu0 0.0
        %793 = vmatprep.subr.mxu0 0.0
        %794 = vmatpush1.msra.mxu0 0.0
        %795 = vmatprep.subr.mxu0 0.0
        %796 = vmatpush1.msra.mxu0 0.0
        %797 = vmatprep.subr.mxu0 0.0
        %798 = vmatpush1.msra.mxu0 0.0
        %799 = vmatprep.subr.mxu0 0.0
        %800 = vmatpush1.msra.mxu0 0.0
        %801 = vmatprep.subr.mxu0 0.0
        %802 = vmatpush1.msra.mxu0 0.0
        %803 = vmatprep.mubr.f32.mxu0 0.0
        %804 = vmatmul.mubr.f32.gmra.mrb[0].mxu0 %v644
        %v805 = vpop.f32.mrb[0].mxu0
        %v806 = vadd.f32 0.0, %v805
        %v807 = vpop.f32.mrb[0].mxu0
        %v808 = vadd.f32 0.0, %v807
        %809 = vmatprep.mubr.f32.mxu0 0.0
        %810 = vmatmul.mubr.f32.gmra.mrb[0].mxu0 %v647
        %v811 = vpop.f32.mrb[0].mxu0
        %v812 = vadd.f32 0.0, %v811
        %v813 = vpop.f32.mrb[0].mxu0
        %v814 = vadd.f32 0.0, %v813
        %815 = vmatprep.mubr.f32.mxu0 0.0
        %816 = vmatmul.mubr.f32.gmra.mrb[0].mxu0 %v650
        %v817 = vpop.f32.mrb[0].mxu0
        %v818 = vadd.f32 0.0, %v817
        %v819 = vpop.f32.mrb[0].mxu0
        %v820 = vadd.f32 0.0, %v819
        %821 = vmatprep.mubr.f32.mxu0 0.0
        %822 = vmatmul.mubr.f32.gmra.mrb[0].mxu0 %v653
        %v823 = vpop.f32.mrb[0].mxu0
        %v824 = vadd.f32 0.0, %v823
        %v825 = vpop.f32.mrb[0].mxu0
        %v826 = vadd.f32 0.0, %v825
        %827 = vmatprep.mubr.f32.mxu0 0.0
        %828 = vmatmul.mubr.f32.gmra.mrb[0].mxu0 %v656
        %v829 = vpop.f32.mrb[0].mxu0
        %v830 = vadd.f32 0.0, %v829
        %v831 = vpop.f32.mrb[0].mxu0
        %v832 = vadd.f32 0.0, %v831
        %833 = vmatprep.mubr.f32.mxu0 0.0
        %834 = vmatmul.mubr.f32.gmra.mrb[0].mxu0 %v659
        %v835 = vpop.f32.mrb[0].mxu0
        %v836 = vadd.f32 0.0, %v835
        %v837 = vpop.f32.mrb[0].mxu0
        %v838 = vadd.f32 0.0, %v837
        %839 = vmatprep.mubr.f32.mxu0 0.0
        %840 = vmatmul.mubr.f32.gmra.mrb[0].mxu0 %v662
        %v841 = vpop.f32.mrb[0].mxu0
        %v842 = vadd.f32 0.0, %v841
        %v843 = vpop.f32.mrb[0].mxu0
        %v844 = vadd.f32 0.0, %v843
        %845 = vmatprep.mubr.f32.mxu0 0.0
        %846 = vmatmul.mubr.f32.gmra.mrb[0].mxu0 %v665
        %v847 = vpop.f32.mrb[0].mxu0
        %v848 = vadd.f32 0.0, %v847
        %v849 = vpop.f32.mrb[0].mxu0
        %v850 = vadd.f32 0.0, %v849
        %851 = vmatprep.mubr.f32.mxu0 0.0
        %852 = vmatmul.mubr.f32.gmra.mrb[0].mxu0 %v668
        %v853 = vpop.f32.mrb[0].mxu0
        %v854 = vadd.f32 0.0, %v853
        %v855 = vpop.f32.mrb[0].mxu0
        %v856 = vadd.f32 0.0, %v855
        %857 = vmatprep.mubr.f32.mxu0 0.0
        %858 = vmatmul.mubr.f32.gmra.mrb[0].mxu0 %v671
        %v859 = vpop.f32.mrb[0].mxu0
        %v860 = vadd.f32 0.0, %v859
        %v861 = vpop.f32.mrb[0].mxu0
        %v862 = vadd.f32 0.0, %v861
        %863 = vmatprep.mubr.f32.mxu0 0.0
        %864 = vmatmul.mubr.f32.gmra.mrb[0].mxu0 %v674
        %v865 = vpop.f32.mrb[0].mxu0
        %v866 = vadd.f32 0.0, %v865
        %v867 = vpop.f32.mrb[0].mxu0
        %v868 = vadd.f32 0.0, %v867
        %869 = vmatprep.mubr.f32.mxu0 0.0
        %870 = vmatmul.mubr.f32.gmra.mrb[0].mxu0 %v677
        %v871 = vpop.f32.mrb[0].mxu0
        %v872 = vadd.f32 0.0, %v871
        %v873 = vpop.f32.mrb[0].mxu0
        %v874 = vadd.f32 0.0, %v873
        %875 = vmatprep.mubr.f32.mxu0 0.0
        %876 = vmatmul.mubr.f32.gmra.mrb[0].mxu0 %v680
        %v877 = vpop.f32.mrb[0].mxu0
        %v878 = vadd.f32 0.0, %v877
        %v879 = vpop.f32.mrb[0].mxu0
        %v880 = vadd.f32 0.0, %v879
        %881 = vmatprep.mubr.f32.mxu0 0.0
        %882 = vmatmul.mubr.f32.gmra.mrb[0].mxu0 %v683
        %v883 = vpop.f32.mrb[0].mxu0
        %v884 = vadd.f32 0.0, %v883
        %v885 = vpop.f32.mrb[0].mxu0
        %v886 = vadd.f32 0.0, %v885
        %887 = vmatprep.mubr.f32.mxu0 0.0
        %888 = vmatmul.mubr.f32.gmra.mrb[0].mxu0 %v686
        %v889 = vpop.f32.mrb[0].mxu0
        %v890 = vadd.f32 0.0, %v889
        %v891 = vpop.f32.mrb[0].mxu0
        %v892 = vadd.f32 0.0, %v891
        %893 = vmatprep.mubr.f32.mxu0 0.0
        %894 = vmatmul.mubr.f32.gmra.mrb[0].mxu0 %v689
        %v895 = vpop.f32.mrb[0].mxu0
        %v896 = vadd.f32 0.0, %v895
        %v897 = vpop.f32.mrb[0].mxu0
        %v898 = vadd.f32 0.0, %v897
        %899 = vmatprep.mubr.f32.mxu0 0.0
        %900 = vmatmul.mubr.f32.gmra.mrb[0].mxu0 %v692
        %v901 = vpop.f32.mrb[0].mxu0
        %v902 = vadd.f32 0.0, %v901
        %v903 = vpop.f32.mrb[0].mxu0
        %v904 = vadd.f32 0.0, %v903
        %905 = vmatprep.mubr.f32.mxu0 0.0
        %906 = vmatmul.mubr.f32.gmra.mrb[0].mxu0 %v695
        %v907 = vpop.f32.mrb[0].mxu0
        %v908 = vadd.f32 0.0, %v907
        %v909 = vpop.f32.mrb[0].mxu0
        %v910 = vadd.f32 0.0, %v909
        %911 = vmatprep.mubr.f32.mxu0 0.0
        %912 = vmatmul.mubr.f32.gmra.mrb[0].mxu0 %v698
        %v913 = vpop.f32.mrb[0].mxu0
        %v914 = vadd.f32 0.0, %v913
        %v915 = vpop.f32.mrb[0].mxu0
        %v916 = vadd.f32 0.0, %v915
        %917 = vmatprep.mubr.f32.mxu0 0.0
        %918 = vmatmul.mubr.f32.gmra.mrb[0].mxu0 %v701
        %v919 = vpop.f32.mrb[0].mxu0
        %v920 = vadd.f32 0.0, %v919
        %v921 = vpop.f32.mrb[0].mxu0
        %v922 = vadd.f32 0.0, %v921
        %923 = vmatprep.mubr.f32.mxu0 0.0
        %924 = vmatmul.mubr.f32.gmra.mrb[0].mxu0 %v704
        %v925 = vpop.f32.mrb[0].mxu0
        %v926 = vadd.f32 0.0, %v925
        %v927 = vpop.f32.mrb[0].mxu0
        %v928 = vadd.f32 0.0, %v927
        %929 = vmatprep.mubr.f32.mxu0 0.0
        %930 = vmatmul.mubr.f32.gmra.mrb[0].mxu0 %v707
        %v931 = vpop.f32.mrb[0].mxu0
        %v932 = vadd.f32 0.0, %v931
        %v933 = vpop.f32.mrb[0].mxu0
        %v934 = vadd.f32 0.0, %v933
        %935 = vmatprep.mubr.f32.mxu0 0.0
        %936 = vmatmul.mubr.f32.gmra.mrb[0].mxu0 %v710
        %v937 = vpop.f32.mrb[0].mxu0
        %v938 = vadd.f32 0.0, %v937
        %v939 = vpop.f32.mrb[0].mxu0
        %v940 = vadd.f32 0.0, %v939
        %941 = vmatprep.mubr.f32.mxu0 0.0
        %942 = vmatmul.mubr.f32.gmra.mrb[0].mxu0 %v713
        %v943 = vpop.f32.mrb[0].mxu0
        %v944 = vadd.f32 0.0, %v943
        %v945 = vpop.f32.mrb[0].mxu0
        %v946 = vadd.f32 0.0, %v945
        %947 = vmatprep.mubr.f32.mxu0 0.0
        %948 = vmatmul.mubr.f32.gmra.mrb[0].mxu0 %v716
        %v949 = vpop.f32.mrb[0].mxu0
        %v950 = vadd.f32 0.0, %v949
        %v951 = vpop.f32.mrb[0].mxu0
        %v952 = vadd.f32 0.0, %v951
        %953 = vmatprep.mubr.f32.mxu0 0.0
        %954 = vmatmul.mubr.f32.gmra.mrb[0].mxu0 %v719
        %v955 = vpop.f32.mrb[0].mxu0
        %v956 = vadd.f32 0.0, %v955
        %v957 = vpop.f32.mrb[0].mxu0
        %v958 = vadd.f32 0.0, %v957
        %959 = vmatprep.mubr.f32.mxu0 0.0
        %960 = vmatmul.mubr.f32.gmra.mrb[0].mxu0 %v722
        %v961 = vpop.f32.mrb[0].mxu0
        %v962 = vadd.f32 0.0, %v961
        %v963 = vpop.f32.mrb[0].mxu0
        %v964 = vadd.f32 0.0, %v963
        %965 = vmatprep.mubr.f32.mxu0 0.0
        %966 = vmatmul.mubr.f32.gmra.mrb[0].mxu0 %v725
        %v967 = vpop.f32.mrb[0].mxu0
        %v968 = vadd.f32 0.0, %v967
        %v969 = vpop.f32.mrb[0].mxu0
        %v970 = vadd.f32 0.0, %v969
        %971 = vmatprep.mubr.f32.mxu0 0.0
        %972 = vmatmul.mubr.f32.gmra.mrb[0].mxu0 %v728
        %v973 = vpop.f32.mrb[0].mxu0
        %v974 = vadd.f32 0.0, %v973
        %v975 = vpop.f32.mrb[0].mxu0
        %v976 = vadd.f32 0.0, %v975
        %977 = vmatprep.mubr.f32.mxu0 0.0
        %978 = vmatmul.mubr.f32.gmra.mrb[0].mxu0 %v731
        %v979 = vpop.f32.mrb[0].mxu0
        %v980 = vadd.f32 0.0, %v979
        %v981 = vpop.f32.mrb[0].mxu0
        %v982 = vadd.f32 0.0, %v981
        %983 = vmatprep.mubr.f32.mxu0 0.0
        %984 = vmatmul.mubr.f32.gmra.mrb[0].mxu0 %v734
        %v985 = vpop.f32.mrb[0].mxu0
        %v986 = vadd.f32 0.0, %v985
        %v987 = vpop.f32.mrb[0].mxu0
        %v988 = vadd.f32 0.0, %v987
        %989 = vmatprep.mubr.f32.mxu0 0.0
        %990 = vmatmul.mubr.f32.gmra.mrb[0].mxu0 %v737
        %v991 = vpop.f32.mrb[0].mxu0
        %v992 = vadd.f32 0.0, %v991
        %v993 = vpop.f32.mrb[0].mxu0
        %v994 = vadd.f32 0.0, %v993
        %995 = vdwg.mxu0
        %v996 = vadd.f32 %v514, %v806
        %v997 = vadd.f32 %v515, %v808
        %v998 = vadd.f32 %v516, %v812
        %v999 = vadd.f32 %v517, %v814
        %v1000 = vadd.f32 %v518, %v818
        %v1001 = vadd.f32 %v519, %v820
        %v1002 = vadd.f32 %v520, %v824
        %v1003 = vadd.f32 %v521, %v826
        %v1004 = vadd.f32 %v522, %v830
        %v1005 = vadd.f32 %v523, %v832
        %v1006 = vadd.f32 %v524, %v836
        %v1007 = vadd.f32 %v525, %v838
        %v1008 = vadd.f32 %v526, %v842
        %v1009 = vadd.f32 %v527, %v844
        %v1010 = vadd.f32 %v528, %v848
        %v1011 = vadd.f32 %v529, %v850
        %v1012 = vadd.f32 %v530, %v854
        %v1013 = vadd.f32 %v531, %v856
        %v1014 = vadd.f32 %v532, %v860
        %v1015 = vadd.f32 %v533, %v862
        %v1016 = vadd.f32 %v534, %v866
        %v1017 = vadd.f32 %v535, %v868
        %v1018 = vadd.f32 %v536, %v872
        %v1019 = vadd.f32 %v537, %v874
        %v1020 = vadd.f32 %v538, %v878
        %v1021 = vadd.f32 %v539, %v880
        %v1022 = vadd.f32 %v540, %v884
        %v1023 = vadd.f32 %v541, %v886
        %v1024 = vadd.f32 %v542, %v890
        %v1025 = vadd.f32 %v543, %v892
        %v1026 = vadd.f32 %v544, %v896
        %v1027 = vadd.f32 %v545, %v898
        %v1028 = vadd.f32 %v546, %v902
        %v1029 = vadd.f32 %v547, %v904
        %v1030 = vadd.f32 %v548, %v908
        %v1031 = vadd.f32 %v549, %v910
        %v1032 = vadd.f32 %v550, %v914
        %v1033 = vadd.f32 %v551, %v916
        %v1034 = vadd.f32 %v552, %v920
        %v1035 = vadd.f32 %v553, %v922
        %v1036 = vadd.f32 %v554, %v926
        %v1037 = vadd.f32 %v555, %v928
        %v1038 = vadd.f32 %v556, %v932
        %v1039 = vadd.f32 %v557, %v934
        %v1040 = vadd.f32 %v558, %v938
        %v1041 = vadd.f32 %v559, %v940
        %v1042 = vadd.f32 %v560, %v944
        %v1043 = vadd.f32 %v561, %v946
        %v1044 = vadd.f32 %v562, %v950
        %v1045 = vadd.f32 %v563, %v952
        %v1046 = vadd.f32 %v564, %v956
        %v1047 = vadd.f32 %v565, %v958
        %v1048 = vadd.f32 %v566, %v962
        %v1049 = vadd.f32 %v567, %v964
        %v1050 = vadd.f32 %v568, %v968
        %v1051 = vadd.f32 %v569, %v970
        %v1052 = vadd.f32 %v570, %v974
        %v1053 = vadd.f32 %v571, %v976
        %v1054 = vadd.f32 %v572, %v980
        %v1055 = vadd.f32 %v573, %v982
        %v1056 = vadd.f32 %v574, %v986
        %v1057 = vadd.f32 %v575, %v988
        %v1058 = vadd.f32 %v576, %v992
        %v1059 = vadd.f32 %v577, %v994
        %1060 = vst [vmem:[%s392] sm:$0xff] %v996
        %1061 = vst [vmem:[%s392 + $0x8] sm:$0xff] %v997
        %1062 = vst [vmem:[%s392 + $0x10] sm:$0xff] %v998
        %1063 = vst [vmem:[%s392 + $0x18] sm:$0xff] %v999
        %1064 = vst [vmem:[%s392 + $0x20] sm:$0xff] %v1000
        %1065 = vst [vmem:[%s392 + $0x28] sm:$0xff] %v1001
        %1066 = vst [vmem:[%s392 + $0x30] sm:$0xff] %v1002
        %1067 = vst [vmem:[%s392 + $0x38] sm:$0xff] %v1003
        %1068 = vst [vmem:[%s392 + $0x40] sm:$0xff] %v1004
        %1069 = vst [vmem:[%s392 + $0x48] sm:$0xff] %v1005
        %1070 = vst [vmem:[%s392 + $0x50] sm:$0xff] %v1006
        %1071 = vst [vmem:[%s392 + $0x58] sm:$0xff] %v1007
        %1072 = vst [vmem:[%s392 + $0x60] sm:$0xff] %v1008
        %1073 = vst [vmem:[%s392 + $0x68] sm:$0xff] %v1009
        %1074 = vst [vmem:[%s392 + $0x70] sm:$0xff] %v1010
        %1075 = vst [vmem:[%s392 + $0x78] sm:$0xff] %v1011
        %1076 = vst [vmem:[%s392 + $0x80] sm:$0xff] %v1012
        %1077 = vst [vmem:[%s392 + $0x88] sm:$0xff] %v1013
        %1078 = vst [vmem:[%s392 + $0x90] sm:$0xff] %v1014
        %1079 = vst [vmem:[%s392 + $0x98] sm:$0xff] %v1015
        %1080 = vst [vmem:[%s392 + $0xa0] sm:$0xff] %v1016
        %1081 = vst [vmem:[%s392 + $0xa8] sm:$0xff] %v1017
        %1082 = vst [vmem:[%s392 + $0xb0] sm:$0xff] %v1018
        %1083 = vst [vmem:[%s392 + $0xb8] sm:$0xff] %v1019
        %1084 = vst [vmem:[%s392 + $0xc0] sm:$0xff] %v1020
        %1085 = vst [vmem:[%s392 + $0xc8] sm:$0xff] %v1021
        %1086 = vst [vmem:[%s392 + $0xd0] sm:$0xff] %v1022
        %1087 = vst [vmem:[%s392 + $0xd8] sm:$0xff] %v1023
        %1088 = vst [vmem:[%s392 + $0xe0] sm:$0xff] %v1024
        %1089 = vst [vmem:[%s392 + $0xe8] sm:$0xff] %v1025
        %1090 = vst [vmem:[%s392 + $0xf0] sm:$0xff] %v1026
        %1091 = vst [vmem:[%s392 + $0xf8] sm:$0xff] %v1027
        %1092 = vst [vmem:[%s392 + $0x100] sm:$0xff] %v1028
        %1093 = vst [vmem:[%s392 + $0x108] sm:$0xff] %v1029
        %1094 = vst [vmem:[%s392 + $0x110] sm:$0xff] %v1030
        %1095 = vst [vmem:[%s392 + $0x118] sm:$0xff] %v1031
        %1096 = vst [vmem:[%s392 + $0x120] sm:$0xff] %v1032
        %1097 = vst [vmem:[%s392 + $0x128] sm:$0xff] %v1033
        %1098 = vst [vmem:[%s392 + $0x130] sm:$0xff] %v1034
        %1099 = vst [vmem:[%s392 + $0x138] sm:$0xff] %v1035
        %1100 = vst [vmem:[%s392 + $0x140] sm:$0xff] %v1036
        %1101 = vst [vmem:[%s392 + $0x148] sm:$0xff] %v1037
        %1102 = vst [vmem:[%s392 + $0x150] sm:$0xff] %v1038
        %1103 = vst [vmem:[%s392 + $0x158] sm:$0xff] %v1039
        %1104 = vst [vmem:[%s392 + $0x160] sm:$0xff] %v1040
        %1105 = vst [vmem:[%s392 + $0x168] sm:$0xff] %v1041
        %1106 = vst [vmem:[%s392 + $0x170] sm:$0xff] %v1042
        %1107 = vst [vmem:[%s392 + $0x178] sm:$0xff] %v1043
        %1108 = vst [vmem:[%s392 + $0x180] sm:$0xff] %v1044
        %1109 = vst [vmem:[%s392 + $0x188] sm:$0xff] %v1045
        %1110 = vst [vmem:[%s392 + $0x190] sm:$0xff] %v1046
        %1111 = vst [vmem:[%s392 + $0x198] sm:$0xff] %v1047
        %1112 = vst [vmem:[%s392 + $0x1a0] sm:$0xff] %v1048
        %1113 = vst [vmem:[%s392 + $0x1a8] sm:$0xff] %v1049
        %1114 = vst [vmem:[%s392 + $0x1b0] sm:$0xff] %v1050
        %1115 = vst [vmem:[%s392 + $0x1b8] sm:$0xff] %v1051
        %1116 = vst [vmem:[%s392 + $0x1c0] sm:$0xff] %v1052
        %1117 = vst [vmem:[%s392 + $0x1c8] sm:$0xff] %v1053
        %1118 = vst [vmem:[%s392 + $0x1d0] sm:$0xff] %v1054
        %1119 = vst [vmem:[%s392 + $0x1d8] sm:$0xff] %v1055
        %1120 = vst [vmem:[%s392 + $0x1e0] sm:$0xff] %v1056
        %1121 = vst [vmem:[%s392 + $0x1e8] sm:$0xff] %v1057
        %1122 = vst [vmem:[%s392 + $0x1f0] sm:$0xff] %v1058
        %1123 = vst [vmem:[%s392 + $0x1f8] sm:$0xff] %v1059
        %s1124 = sand.u32 %s143, 1
        %s1125 = scalar_lea.sflag [#allocation4], %s1124
        %s1126 = sand.u32 %s143, 1
        %s1127 = scalar_lea.vmem [#allocation8], %s1126
        %s1128 = sand.u32 %s33, 1
        %s1129 = scalar_lea.sflag [#allocation10], %s1128
        %s1130 = sand.u32 %s169, 1
        %s1131 = scalar_lea.vmem [#allocation9], %s1130
        %s1132 = sand.u32 %s33, 1
        %s1133 = scalar_lea.sflag [#allocation10], %s1132
        %s1134 = sand.u32 %s195, 1
        %s1135 = scalar_lea.vmem [#allocation11], %s1134
        %s1136 = sand.u32 %s221, 1
        %s1137 = scalar_lea.sflag [#allocation13], %s1136
        %s1138 = sand.u32 %s221, 1
        %s1139 = smul.addr %s1138, 512
        %s1140 = scalar_lea.vmem [#allocation12], %s1139
        // Predicated region
        $region49: #{tpu_custom_call.1} parent=31 // pred_check
          %p1141 = pneg %p153
        $region50: #{tpu_custom_call.1} parent=31 // pred_check_branch
          %1143 = sbr.rel (%p1141) target = $region52
        $region51: #{tpu_custom_call.1} parent=31 // pred_region
          %s1145 = ssub.s32 16, 16
          %1146 = vsyncadd %s1125, %s1145
          %s1147 = smul.addr %s37, 16
          %s1148 = scalar_lea.hbm %s3, %s1147
          %s1150 = sshll.u32 %s1127, 4
          %s1151 = int_to_ptr.vmem [resolvable:$true] %s1150
          %1153 = dma.vmem_to_hbm [thread:$0]  %s1151, 16, %s1148, %s1125
        $region52: #{tpu_custom_call.1} parent=31 // pred_fallthru
          _
        // Predicated region
        $region53: #{tpu_custom_call.1} parent=31 // pred_check
          %p1154 = pneg %p179
        $region54: #{tpu_custom_call.1} parent=31 // pred_check_branch
          %1156 = sbr.rel (%p1154) target = $region56
        $region55: #{tpu_custom_call.1} parent=31 // pred_region
          %s1158 = ssub.s32 16, 16
          %1159 = vsyncadd %s1129, %s1158
          %s1160 = smul.addr %s37, 16
          %s1161 = scalar_lea.hbm %s4, %s1160
          %s1163 = sshll.u32 %s1131, 4
          %s1164 = int_to_ptr.vmem [resolvable:$true] %s1163
          %1166 = dma.vmem_to_hbm [thread:$0]  %s1164, 16, %s1161, %s1129
        $region56: #{tpu_custom_call.1} parent=31 // pred_fallthru
          _
        // Predicated region
        $region57: #{tpu_custom_call.1} parent=31 // pred_check
          %p1167 = pneg %p205
        $region58: #{tpu_custom_call.1} parent=31 // pred_check_branch
          %1169 = sbr.rel (%p1167) target = $region60
        $region59: #{tpu_custom_call.1} parent=31 // pred_region
          %s1171 = ssub.s32 16, 16
          %1172 = vsyncadd %s1133, %s1171
          %s1173 = smul.addr %s37, 16
          %s1174 = scalar_lea.hbm %s5, %s1173
          %s1176 = sshll.u32 %s1135, 4
          %s1177 = int_to_ptr.vmem [resolvable:$true] %s1176
          %1179 = dma.vmem_to_hbm [thread:$0]  %s1177, 16, %s1174, %s1133
        $region60: #{tpu_custom_call.1} parent=31 // pred_fallthru
          _
        // Predicated region
        $region61: #{tpu_custom_call.1} parent=31 // pred_check
          %p1180 = pneg %p231
        $region62: #{tpu_custom_call.1} parent=31 // pred_check_branch
          %1182 = sbr.rel (%p1180) target = $region64
        $region63: #{tpu_custom_call.1} parent=31 // pred_region
          %s1184 = ssub.s32 8192, 8192
          %1185 = vsyncadd %s1137, %s1184
          %s1186 = smul.addr %s37, 64
          %s1187 = smul.addr %s1186, 128
          %s1188 = scalar_lea.hbm %s6, %s1187
          %s1189 = sshll.u32 %s1140, 4
          %s1190 = int_to_ptr.vmem [resolvable:$true] %s1189
          %1195 = dma.vmem_to_hbm [thread:$0]  %s1190, 8192, %s1188, %s1137, 256, 256, 16
        $region64: #{tpu_custom_call.1} parent=31 // pred_fallthru
          _
      $region32: #{tpu_custom_call.1} parent=5 // pred_fallthru
        _
      %p1196 = scmp.le.s32.totalorder 2, %s28
      // Predicated region
      $region65: #{tpu_custom_call.1} parent=5 // pred_check
        %p1197 = pneg %p1196
      $region66: #{tpu_custom_call.1} parent=5 // pred_check_branch
        %1199 = sbr.rel (%p1197) target = $region68
      $region67: #{tpu_custom_call.1} parent=5 // pred_region
        %s1200 = ssub.s32 %s28, 2
        // Predicated region
        $region69: #{tpu_custom_call.1} parent=67 // pred_check
          %p1201 = pneg %p159
        $region70: #{tpu_custom_call.1} parent=67 // pred_check_branch
          %1203 = sbr.rel (%p1201) target = $region72
        $region71: #{tpu_custom_call.1} parent=67 // pred_region
          %s1204 = sand.u32 %s144, 1
          %s1205 = scalar_lea.sflag [#allocation4], %s1204
          %s1206 = sand.u32 %s144, 1
          %s1207 = scalar_lea.vmem [#allocation8], %s1206
          %1208 = dma.done %s1205, 16
        $region72: #{tpu_custom_call.1} parent=67 // pred_fallthru
          _
        // Predicated region
        $region73: #{tpu_custom_call.1} parent=67 // pred_check
          %p1209 = pneg %p185
        $region74: #{tpu_custom_call.1} parent=67 // pred_check_branch
          %1211 = sbr.rel (%p1209) target = $region76
        $region75: #{tpu_custom_call.1} parent=67 // pred_region
          %s1212 = sand.u32 %s34, 1
          %s1213 = scalar_lea.sflag [#allocation10], %s1212
          %s1214 = sand.u32 %s170, 1
          %s1215 = scalar_lea.vmem [#allocation9], %s1214
          %1216 = dma.done %s1213, 16
        $region76: #{tpu_custom_call.1} parent=67 // pred_fallthru
          _
        // Predicated region
        $region77: #{tpu_custom_call.1} parent=67 // pred_check
          %p1217 = pneg %p211
        $region78: #{tpu_custom_call.1} parent=67 // pred_check_branch
          %1219 = sbr.rel (%p1217) target = $region80
        $region79: #{tpu_custom_call.1} parent=67 // pred_region
          %s1220 = sand.u32 %s34, 1
          %s1221 = scalar_lea.sflag [#allocation10], %s1220
          %s1222 = sand.u32 %s196, 1
          %s1223 = scalar_lea.vmem [#allocation11], %s1222
          %1224 = dma.done %s1221, 16
        $region80: #{tpu_custom_call.1} parent=67 // pred_fallthru
          _
        // Predicated region
        $region81: #{tpu_custom_call.1} parent=67 // pred_check
          %p1225 = pneg %p237
        $region82: #{tpu_custom_call.1} parent=67 // pred_check_branch
          %1227 = sbr.rel (%p1225) target = $region84
        $region83: #{tpu_custom_call.1} parent=67 // pred_region
          %s1228 = sand.u32 %s222, 1
          %s1229 = scalar_lea.sflag [#allocation13], %s1228
          %s1230 = sand.u32 %s222, 1
          %s1231 = smul.addr %s1230, 512
          %s1232 = scalar_lea.vmem [#allocation12], %s1231
          %1233 = dma.done %s1229, 8192
        $region84: #{tpu_custom_call.1} parent=67 // pred_fallthru
          _
      $region68: #{tpu_custom_call.1} parent=5 // pred_fallthru
        _
    $region6: #{tpu_custom_call.1} parent=1 // loop_footer
      %s32 = sadd.s32 1, %s28
    $region7: #{tpu_custom_call.1} parent=1 // loop_footer_branch
      %27 = sbr.rel target = $region3
    $region8: #{tpu_custom_call.1} parent=1 // loop_exit
      _
    %1234 = vsyncpa [#allocation3], 1
    %s1235 = scalar_lea.sflag [#allocation3], 1
    %1236 = vsyncpa %s1235, 1
    %1237 = vsyncpa [#allocation6], 1
    %s1238 = scalar_lea.sflag [#allocation6], 1
    %1239 = vsyncpa %s1238, 1
    %1240 = vsyncpa [#allocation4], 1
    %s1241 = scalar_lea.sflag [#allocation4], 1
    %1242 = vsyncpa %s1241, 1
    %1243 = vsyncpa [#allocation10], 1
    %s1244 = scalar_lea.sflag [#allocation10], 1
    %1245 = vsyncpa %s1244, 1
    %1246 = vsyncpa [#allocation13], 1
    %s1247 = scalar_lea.sflag [#allocation13], 1
    %1248 = vsyncpa %s1247, 1

</llo_original>
